<compile_context>
chip_gen: v7x
topology: tpu7x:2x2x1
jax: 0.10.0
libtpu: 0.0.40
codegen_flags: <defaults>
</compile_context>

<pallas_src>
import functools

import jax
import jax.numpy as jnp
from jax.experimental import pallas as pl
from jax.experimental.pallas import tpu as pltpu


def _round_up(x, m):
    return (x + m - 1) // m * m


# ---------------------------------------------------------------------------
# Kernel 1: input projection (parallel over time chunks)
#   X_proj = X @ W_ih^T + (b_ih + b_hh)
# ---------------------------------------------------------------------------
def _input_proj_kernel(x_ref, w_ref, b_ref, out_ref):
    out_ref[...] = (
        jnp.dot(x_ref[...], w_ref[...], preferred_element_type=jnp.float32)
        + b_ref[...]
    ).astype(out_ref.dtype)


def _input_projection(x2d, wih_t, bias, *, tile_rows):
    rows, e = x2d.shape
    h4 = wih_t.shape[1]
    grid = (rows // tile_rows,)
    return pl.pallas_call(
        _input_proj_kernel,
        out_shape=jax.ShapeDtypeStruct((rows, h4), jnp.float32),
        grid_spec=pltpu.PrefetchScalarGridSpec(
            num_scalar_prefetch=0,
            grid=grid,
            in_specs=[
                pl.BlockSpec((tile_rows, e), lambda i: (i, 0)),   # X rows
                pl.BlockSpec((e, h4), lambda i: (0, 0)),          # W_ih^T (resident)
                pl.BlockSpec((1, h4), lambda i: (0, 0)),          # bias   (resident)
            ],
            out_specs=pl.BlockSpec((tile_rows, h4), lambda i: (i, 0)),
        ),
        compiler_params=pltpu.CompilerParams(
            dimension_semantics=("parallel",)),
    )(x2d, wih_t, bias)


# ---------------------------------------------------------------------------
# Kernel 2: LSTM recurrence over chunked time.
#   Per step only:  gates = X_proj[t] + h_prev @ W_hh^T ;  gate nonlinearities.
#   h/c state is carried in the resident output blocks across grid steps.
# ---------------------------------------------------------------------------
def _lstm_recurrence_kernel(xp_ref, whh_ref, h_ref, c_ref, *,
                            chunk_len, hidden, seq_len):
    chunk = pl.program_id(0)

    @pl.when(chunk == 0)
    def _():
        h_ref[...] = jnp.zeros_like(h_ref)
        c_ref[...] = jnp.zeros_like(c_ref)

    mask_tail = (seq_len % chunk_len) != 0  # static Python bool

    def step(s, carry):
        h, c = carry
        # (B, 4H): pre-projected input gates + recurrent projection
        gates = xp_ref[s] + jnp.dot(
            h.astype(whh_ref.dtype), whh_ref[...],
            preferred_element_type=jnp.float32)
        i_g = jax.nn.sigmoid(gates[:, 0 * hidden:1 * hidden])
        f_g = jax.nn.sigmoid(gates[:, 1 * hidden:2 * hidden])
        g_g = jnp.tanh(gates[:, 2 * hidden:3 * hidden])
        o_g = jax.nn.sigmoid(gates[:, 3 * hidden:4 * hidden])
        c_new = f_g * c + i_g * g_g
        h_new = o_g * jnp.tanh(c_new)
        if mask_tail:  # only emitted when T is not a multiple of chunk_len
            valid = (chunk * chunk_len + s) < seq_len
            h_new = jnp.where(valid, h_new, h)
            c_new = jnp.where(valid, c_new, c)
        return h_new, c_new

    h_fin, c_fin = jax.lax.fori_loop(
        0, chunk_len, step, (h_ref[...], c_ref[...]), unroll=True)
    h_ref[...] = h_fin
    c_ref[...] = c_fin


def _lstm_recurrence(xproj_tbf, whh_t, *, chunk_len, hidden, seq_len):
    t_pad, b_pad, h4 = xproj_tbf.shape
    grid = (t_pad // chunk_len,)
    kernel = functools.partial(
        _lstm_recurrence_kernel,
        chunk_len=chunk_len, hidden=hidden, seq_len=seq_len)
    h, c = pl.pallas_call(
        kernel,
        out_shape=(jax.ShapeDtypeStruct((b_pad, hidden), jnp.float32),
                   jax.ShapeDtypeStruct((b_pad, hidden), jnp.float32)),
        grid_spec=pltpu.PrefetchScalarGridSpec(
            num_scalar_prefetch=0,
            grid=grid,
            in_specs=[
                pl.BlockSpec((chunk_len, b_pad, h4), lambda t: (t, 0, 0)),
                pl.BlockSpec((whh_t.shape[0], h4), lambda t: (0, 0)),  # resident
            ],
            out_specs=[
                pl.BlockSpec((b_pad, hidden), lambda t: (0, 0)),  # hidden (resident)
                pl.BlockSpec((b_pad, hidden), lambda t: (0, 0)),  # cell   (resident)
            ],
        ),
        compiler_params=pltpu.CompilerParams(
            dimension_semantics=("arbitrary",)),   # time chunks are sequential
    )(xproj_tbf, whh_t)
    return h, c


# ---------------------------------------------------------------------------
# Full forward (embedding gather + padding is XLA glue; matmuls in Pallas)
# ---------------------------------------------------------------------------
def encoder_forward(tokens, embedding, w_ih, w_hh, b_ih, b_hh, *,
                    mxu_dtype=jnp.float32):
    """tokens: int32 (B, T).  Weights in PyTorch layout: w_ih (4H,E),
    w_hh (4H,H), b_ih/b_hh (4H,).  Returns (hidden, cell), each (1, B, H) f32."""
    b, t = tokens.shape
    _, e = embedding.shape
    h4 = w_ih.shape[0]
    hidden = h4 // 4

    chunk_len = min(t, 32)                    # time steps per grid step
    t_pad = _round_up(t, chunk_len)
    b_pad = _round_up(max(b, 8), 8)           # f32 sublane-friendly batch

    # Time-major gather: (T, B, E) directly -- no activation transpose needed.
    emb_tbe = jnp.take(embedding, tokens.T, axis=0)
    emb_tbe = jnp.pad(emb_tbe, ((0, t_pad - t), (0, b_pad - b), (0, 0)))

    wih_t = jnp.transpose(w_ih).astype(mxu_dtype)             # (E, 4H)
    whh_t = jnp.transpose(w_hh).astype(mxu_dtype)             # (H, 4H)
    bias = (b_ih + b_hh).reshape(1, h4).astype(jnp.float32)   # combined bias

    # One large parallel matmul for the input projection.
    x2d = emb_tbe.reshape(t_pad * b_pad, e).astype(mxu_dtype)
    xproj = _input_projection(x2d, wih_t, bias,
                              tile_rows=chunk_len * b_pad)
    xproj = xproj.reshape(t_pad, b_pad, h4)                   # (T_pad, B_pad, 4H)

    # Sequential recurrence over chunked time.
    h, c = _lstm_recurrence(xproj, whh_t, chunk_len=chunk_len,
                            hidden=hidden, seq_len=t)

    return h[:b][None], c[:b][None]           # (num_layers=1, B, H) each


class EncoderPallas:
    """Mirror of the PyTorch Encoder module (num_layers=1)."""

    def __init__(self, input_size, hidden_size, embedding_dim, num_layers=1,
                 seed=0, mxu_dtype=jnp.float32):
        assert num_layers == 1, "this kernel implements num_layers=1"
        self.hidden_size = hidden_size
        self.num_layers = num_layers

        key = jax.random.PRNGKey(seed)
        k_emb, k1, k2, k3, k4 = jax.random.split(key, 5)
        bound = 1.0 / jnp.sqrt(hidden_size)
        # nn.Embedding default: N(0,1); nn.LSTM default: U(-1/sqrt(H), 1/sqrt(H))
        self.embedding = jax.random.normal(
            k_emb, (input_size, embedding_dim), dtype=jnp.float32)
        self.w_ih = jax.random.uniform(
            k1, (4 * hidden_size, embedding_dim), jnp.float32, -bound, bound)
        self.w_hh = jax.random.uniform(
            k2, (4 * hidden_size, hidden_size), jnp.float32, -bound, bound)
        self.b_ih = jax.random.uniform(
            k3, (4 * hidden_size,), jnp.float32, -bound, bound)
        self.b_hh = jax.random.uniform(
            k4, (4 * hidden_size,), jnp.float32, -bound, bound)

        # mxu_dtype=jnp.bfloat16 is the recommended setting on v6e/v7x
        # (loosen numeric tolerance to ~1e-2); default f32 matches PyTorch.
        self._forward = jax.jit(
            functools.partial(encoder_forward, mxu_dtype=mxu_dtype))

    def __call__(self, input_seq):
        """input_seq: int32 (B, T).  Returns (hidden, cell), each (1, B, H)."""
        return self._forward(input_seq, self.embedding, self.w_ih, self.w_hh,
                             self.b_ih, self.b_hh)


def _reference_lstm(embedded_bte, w_ih, w_hh, b_ih, b_hh):
    """Pure-JAX reference (PyTorch LSTM semantics) for validation."""
    B, T, E = embedded_bte.shape
    H = w_hh.shape[1]
    bias = b_ih + b_hh

    def step(carry, x_t):
        h, c = carry
        gates = x_t @ w_ih.T + h @ w_hh.T + bias
        i = jax.nn.sigmoid(gates[:, 0 * H:1 * H])
        f = jax.nn.sigmoid(gates[:, 1 * H:2 * H])
        g = jnp.tanh(gates[:, 2 * H:3 * H])
        o = jax.nn.sigmoid(gates[:, 3 * H:4 * H])
        c_new = f * c + i * g
        h_new = o * jnp.tanh(c_new)
        return (h_new, c_new), None

    h0 = jnp.zeros((B, H), jnp.float32)
    c0 = jnp.zeros((B, H), jnp.float32)
    (h_fin, c_fin), _ = jax.lax.scan(
        step, (h0, c0), jnp.transpose(embedded_bte, (1, 0, 2)))
    return h_fin[None], c_fin[None]


if __name__ == "__main__":
    # Small shapes consistent with the module: vocab=16, emb=16, hidden=32, B=2, T=8
    input_size, embedding_dim, hidden_size = 16, 16, 32
    batch, seq_len = 2, 8

    enc = EncoderPallas(input_size, hidden_size, embedding_dim,
                        num_layers=1, seed=0)

    tokens = jax.random.randint(
        jax.random.PRNGKey(0), (batch, seq_len), 0, input_size, dtype=jnp.int32)

    hidden, cell = enc(tokens)
    jax.block_until_ready((hidden, cell))

    # Sanity check against a pure-JAX reference of the same math.
    embedded = jnp.take(enc.embedding, tokens, axis=0)
    h_ref, c_ref = _reference_lstm(embedded, enc.w_ih, enc.w_hh,
                                   enc.b_ih, enc.b_hh)
    assert hidden.shape == (1, batch, hidden_size)
    assert cell.shape == (1, batch, hidden_size)
    assert jnp.allclose(hidden, h_ref, atol=1e-5, rtol=1e-5)
    assert jnp.allclose(cell, c_ref, atol=1e-5, rtol=1e-5)

    print("KERNEL_OK")
</pallas_src>

<mosaic_0001>
module attributes {stable_mosaic.version = 11 : i64} {
  func.func @_input_proj_kernel(%arg0: i32, %arg1: memref<64x16xf32, #tpu.memory_space<vmem>>, %arg2: memref<16x128xf32, #tpu.memory_space<vmem>>, %arg3: memref<1x128xf32, #tpu.memory_space<vmem>>, %arg4: memref<64x128xf32, #tpu.memory_space<vmem>>) attributes {dimension_semantics = [#tpu.dimension_semantics<parallel>], iteration_bounds = array<i64: 1>, scalar_prefetch = 0 : i64, scratch_operands = 0 : i64, tpu.core_type = #tpu.core_type<tc>, window_params = [{transform_indices = @transform_0, window_bounds = array<i64: 64, 16>}, {pipeline_mode = #tpu.pipeline_mode<synchronous>, transform_indices = @transform_1, window_bounds = array<i64: 16, 128>}, {pipeline_mode = #tpu.pipeline_mode<synchronous>, transform_indices = @transform_2, window_bounds = array<i64: 1, 128>}, {transform_indices = @transform_3, window_bounds = array<i64: 64, 128>}]} {
    %c0 = arith.constant 0 : index
    %c0_0 = arith.constant 0 : index
    %0 = vector.load %arg1[%c0, %c0_0] : memref<64x16xf32, #tpu.memory_space<vmem>>, vector<64x16xf32>
    %c0_1 = arith.constant 0 : index
    %c0_2 = arith.constant 0 : index
    %1 = vector.load %arg2[%c0_1, %c0_2] : memref<16x128xf32, #tpu.memory_space<vmem>>, vector<16x128xf32>
    %cst = arith.constant dense<0.000000e+00> : vector<64x128xf32>
    %2 = tpu.matmul %0, %1, %cst {dimension_numbers = #tpu.dot_dimension_numbers<[1], [0], [0], [1], [0, 0, 1, 1], [], []>} : vector<64x16xf32>, vector<16x128xf32>, vector<64x128xf32> -> vector<64x128xf32>
    %c0_3 = arith.constant 0 : index
    %c0_4 = arith.constant 0 : index
    %3 = vector.load %arg3[%c0_3, %c0_4] : memref<1x128xf32, #tpu.memory_space<vmem>>, vector<1x128xf32>
    %4 = vector.broadcast %3 : vector<1x128xf32> to vector<64x128xf32>
    %5 = arith.addf %2, %4 : vector<64x128xf32>
    %c0_5 = arith.constant 0 : index
    %c0_6 = arith.constant 0 : index
    %6 = vector.load %arg4[%c0_5, %c0_6] : memref<64x128xf32, #tpu.memory_space<vmem>>, vector<64x128xf32>
    tpu.vector_store %arg4[%c0_5, %c0_6], %5 {strides = array<i32>} : memref<64x128xf32, #tpu.memory_space<vmem>>, vector<64x128xf32>,
    return
  }
  func.func @transform_0(%arg0: i32) -> (i32, i32) {
    %c0_i32 = arith.constant 0 : i32
    %c0_i32_0 = arith.constant 0 : i32
    return %arg0, %c0_i32 : i32, i32
  }
  func.func @transform_1(%arg0: i32) -> (i32, i32) {
    %c0_i32 = arith.constant 0 : i32
    %c0_i32_0 = arith.constant 0 : i32
    %c0_i32_1 = arith.constant 0 : i32
    return %c0_i32, %c0_i32_0 : i32, i32
  }
  func.func @transform_2(%arg0: i32) -> (i32, i32) {
    %c0_i32 = arith.constant 0 : i32
    %c0_i32_0 = arith.constant 0 : i32
    %c0_i32_1 = arith.constant 0 : i32
    return %c0_i32, %c0_i32_0 : i32, i32
  }
  func.func @transform_3(%arg0: i32) -> (i32, i32) {
    %c0_i32 = arith.constant 0 : i32
    %c0_i32_0 = arith.constant 0 : i32
    return %arg0, %c0_i32 : i32, i32
  }
}

module attributes {stable_mosaic.version = 11 : i64} {
  func.func @_lstm_recurrence_kernel(%arg0: i32, %arg1: memref<8x8x128xf32, #tpu.memory_space<vmem>>, %arg2: memref<32x128xf32, #tpu.memory_space<vmem>>, %arg3: memref<8x32xf32, #tpu.memory_space<vmem>>, %arg4: memref<8x32xf32, #tpu.memory_space<vmem>>) attributes {dimension_semantics = [#tpu.dimension_semantics<arbitrary>], iteration_bounds = array<i64: 1>, scalar_prefetch = 0 : i64, scratch_operands = 0 : i64, tpu.core_type = #tpu.core_type<tc>, window_params = [{transform_indices = @transform_0, window_bounds = array<i64: 8, 8, 128>}, {pipeline_mode = #tpu.pipeline_mode<synchronous>, transform_indices = @transform_1, window_bounds = array<i64: 32, 128>}, {pipeline_mode = #tpu.pipeline_mode<synchronous>, transform_indices = @transform_2, window_bounds = array<i64: 8, 32>}, {pipeline_mode = #tpu.pipeline_mode<synchronous>, transform_indices = @transform_3, window_bounds = array<i64: 8, 32>}]} {
    %c0_i32 = arith.constant 0 : i32
    %0 = arith.cmpi eq, %arg0, %c0_i32 : i32
    %1 = arith.extui %0 : i1 to i32
    %c0_i32_0 = arith.constant 0 : i32
    %2 = arith.cmpi ne, %1, %c0_i32_0 : i32
    scf.if %2 {
      %cst_72 = arith.constant 0.000000e+00 : f32
      %255 = vector.broadcast %cst_72 : f32 to vector<8x32xf32>
      %c0_73 = arith.constant 0 : index
      %c0_74 = arith.constant 0 : index
      %256 = vector.load %arg3[%c0_73, %c0_74] : memref<8x32xf32, #tpu.memory_space<vmem>>, vector<8x32xf32>
      tpu.vector_store %arg3[%c0_73, %c0_74], %255 {strides = array<i32>} : memref<8x32xf32, #tpu.memory_space<vmem>>, vector<8x32xf32>,
      %cst_75 = arith.constant 0.000000e+00 : f32
      %257 = vector.broadcast %cst_75 : f32 to vector<8x32xf32>
      %c0_76 = arith.constant 0 : index
      %c0_77 = arith.constant 0 : index
      %258 = vector.load %arg4[%c0_76, %c0_77] : memref<8x32xf32, #tpu.memory_space<vmem>>, vector<8x32xf32>
      tpu.vector_store %arg4[%c0_76, %c0_77], %257 {strides = array<i32>} : memref<8x32xf32, #tpu.memory_space<vmem>>, vector<8x32xf32>,
    } else {
    }
    %c0 = arith.constant 0 : index
    %c0_1 = arith.constant 0 : index
    %3 = vector.load %arg3[%c0, %c0_1] : memref<8x32xf32, #tpu.memory_space<vmem>>, vector<8x32xf32>
    %c0_2 = arith.constant 0 : index
    %c0_3 = arith.constant 0 : index
    %4 = vector.load %arg4[%c0_2, %c0_3] : memref<8x32xf32, #tpu.memory_space<vmem>>, vector<8x32xf32>
    %c0_i32_4 = arith.constant 0 : i32
    %5 = arith.index_cast %c0_i32_4 : i32 to index
    %c0_5 = arith.constant 0 : index
    %c0_6 = arith.constant 0 : index
    %6 = vector.load %arg1[%5, %c0_5, %c0_6] : memref<8x8x128xf32, #tpu.memory_space<vmem>>, vector<1x8x128xf32>
    %7 = vector.shape_cast %6 : vector<1x8x128xf32> to vector<8x128xf32>
    %c0_7 = arith.constant 0 : index
    %c0_8 = arith.constant 0 : index
    %8 = vector.load %arg2[%c0_7, %c0_8] : memref<32x128xf32, #tpu.memory_space<vmem>>, vector<32x128xf32>
    %cst = arith.constant dense<0.000000e+00> : vector<8x128xf32>
    %9 = tpu.matmul %3, %8, %cst {dimension_numbers = #tpu.dot_dimension_numbers<[1], [0], [0], [1], [0, 0, 1, 1], [], []>} : vector<8x32xf32>, vector<32x128xf32>, vector<8x128xf32> -> vector<8x128xf32>
    %10 = arith.addf %7, %9 : vector<8x128xf32>
    %11 = vector.extract_strided_slice %10 {offsets = [0, 0], sizes = [8, 32], strides = [1, 1]} : vector<8x128xf32> to vector<8x32xf32>
    %12 = arith.negf %11 : vector<8x32xf32>
    %13 = math.exp %12 : vector<8x32xf32>
    %cst_9 = arith.constant 1.000000e+00 : f32
    %14 = vector.broadcast %cst_9 : f32 to vector<8x32xf32>
    %15 = arith.addf %14, %13 : vector<8x32xf32>
    %16 = arith.divf %14, %15 : vector<8x32xf32>
    %17 = vector.extract_strided_slice %10 {offsets = [0, 32], sizes = [8, 32], strides = [1, 1]} : vector<8x128xf32> to vector<8x32xf32>
    %18 = arith.negf %17 : vector<8x32xf32>
    %19 = math.exp %18 : vector<8x32xf32>
    %cst_10 = arith.constant 1.000000e+00 : f32
    %20 = vector.broadcast %cst_10 : f32 to vector<8x32xf32>
    %21 = arith.addf %20, %19 : vector<8x32xf32>
    %22 = arith.divf %20, %21 : vector<8x32xf32>
    %23 = vector.extract_strided_slice %10 {offsets = [0, 64], sizes = [8, 32], strides = [1, 1]} : vector<8x128xf32> to vector<8x32xf32>
    %24 = math.tanh %23 : vector<8x32xf32>
    %25 = vector.extract_strided_slice %10 {offsets = [0, 96], sizes = [8, 32], strides = [1, 1]} : vector<8x128xf32> to vector<8x32xf32>
    %26 = arith.negf %25 : vector<8x32xf32>
    %27 = math.exp %26 : vector<8x32xf32>
    %cst_11 = arith.constant 1.000000e+00 : f32
    %28 = vector.broadcast %cst_11 : f32 to vector<8x32xf32>
    %29 = arith.addf %28, %27 : vector<8x32xf32>
    %30 = arith.divf %28, %29 : vector<8x32xf32>
    %31 = arith.mulf %22, %4 : vector<8x32xf32>
    %32 = arith.mulf %16, %24 : vector<8x32xf32>
    %33 = arith.addf %31, %32 : vector<8x32xf32>
    %34 = math.tanh %33 : vector<8x32xf32>
    %35 = arith.mulf %30, %34 : vector<8x32xf32>
    %c1_i32 = arith.constant 1 : i32
    %36 = arith.index_cast %c1_i32 : i32 to index
    %c0_12 = arith.constant 0 : index
    %c0_13 = arith.constant 0 : index
    %37 = vector.load %arg1[%36, %c0_12, %c0_13] : memref<8x8x128xf32, #tpu.memory_space<vmem>>, vector<1x8x128xf32>
    %38 = vector.shape_cast %37 : vector<1x8x128xf32> to vector<8x128xf32>
    %c0_14 = arith.constant 0 : index
    %c0_15 = arith.constant 0 : index
    %39 = vector.load %arg2[%c0_14, %c0_15] : memref<32x128xf32, #tpu.memory_space<vmem>>, vector<32x128xf32>
    %cst_16 = arith.constant dense<0.000000e+00> : vector<8x128xf32>
    %40 = tpu.matmul %35, %39, %cst_16 {dimension_numbers = #tpu.dot_dimension_numbers<[1], [0], [0], [1], [0, 0, 1, 1], [], []>} : vector<8x32xf32>, vector<32x128xf32>, vector<8x128xf32> -> vector<8x128xf32>
    %41 = arith.addf %38, %40 : vector<8x128xf32>
    %42 = vector.extract_strided_slice %41 {offsets = [0, 0], sizes = [8, 32], strides = [1, 1]} : vector<8x128xf32> to vector<8x32xf32>
    %43 = arith.negf %42 : vector<8x32xf32>
    %44 = math.exp %43 : vector<8x32xf32>
    %cst_17 = arith.constant 1.000000e+00 : f32
    %45 = vector.broadcast %cst_17 : f32 to vector<8x32xf32>
    %46 = arith.addf %45, %44 : vector<8x32xf32>
    %47 = arith.divf %45, %46 : vector<8x32xf32>
    %48 = vector.extract_strided_slice %41 {offsets = [0, 32], sizes = [8, 32], strides = [1, 1]} : vector<8x128xf32> to vector<8x32xf32>
    %49 = arith.negf %48 : vector<8x32xf32>
    %50 = math.exp %49 : vector<8x32xf32>
    %cst_18 = arith.constant 1.000000e+00 : f32
    %51 = vector.broadcast %cst_18 : f32 to vector<8x32xf32>
    %52 = arith.addf %51, %50 : vector<8x32xf32>
    %53 = arith.divf %51, %52 : vector<8x32xf32>
    %54 = vector.extract_strided_slice %41 {offsets = [0, 64], sizes = [8, 32], strides = [1, 1]} : vector<8x128xf32> to vector<8x32xf32>
    %55 = math.tanh %54 : vector<8x32xf32>
    %56 = vector.extract_strided_slice %41 {offsets = [0, 96], sizes = [8, 32], strides = [1, 1]} : vector<8x128xf32> to vector<8x32xf32>
    %57 = arith.negf %56 : vector<8x32xf32>
    %58 = math.exp %57 : vector<8x32xf32>
    %cst_19 = arith.constant 1.000000e+00 : f32
    %59 = vector.broadcast %cst_19 : f32 to vector<8x32xf32>
    %60 = arith.addf %59, %58 : vector<8x32xf32>
    %61 = arith.divf %59, %60 : vector<8x32xf32>
    %62 = arith.mulf %53, %33 : vector<8x32xf32>
    %63 = arith.mulf %47, %55 : vector<8x32xf32>
    %64 = arith.addf %62, %63 : vector<8x32xf32>
    %65 = math.tanh %64 : vector<8x32xf32>
    %66 = arith.mulf %61, %65 : vector<8x32xf32>
    %c2_i32 = arith.constant 2 : i32
    %67 = arith.index_cast %c2_i32 : i32 to index
    %c0_20 = arith.constant 0 : index
    %c0_21 = arith.constant 0 : index
    %68 = vector.load %arg1[%67, %c0_20, %c0_21] : memref<8x8x128xf32, #tpu.memory_space<vmem>>, vector<1x8x128xf32>
    %69 = vector.shape_cast %68 : vector<1x8x128xf32> to vector<8x128xf32>
    %c0_22 = arith.constant 0 : index
    %c0_23 = arith.constant 0 : index
    %70 = vector.load %arg2[%c0_22, %c0_23] : memref<32x128xf32, #tpu.memory_space<vmem>>, vector<32x128xf32>
    %cst_24 = arith.constant dense<0.000000e+00> : vector<8x128xf32>
    %71 = tpu.matmul %66, %70, %cst_24 {dimension_numbers = #tpu.dot_dimension_numbers<[1], [0], [0], [1], [0, 0, 1, 1], [], []>} : vector<8x32xf32>, vector<32x128xf32>, vector<8x128xf32> -> vector<8x128xf32>
    %72 = arith.addf %69, %71 : vector<8x128xf32>
    %73 = vector.extract_strided_slice %72 {offsets = [0, 0], sizes = [8, 32], strides = [1, 1]} : vector<8x128xf32> to vector<8x32xf32>
    %74 = arith.negf %73 : vector<8x32xf32>
    %75 = math.exp %74 : vector<8x32xf32>
    %cst_25 = arith.constant 1.000000e+00 : f32
    %76 = vector.broadcast %cst_25 : f32 to vector<8x32xf32>
    %77 = arith.addf %76, %75 : vector<8x32xf32>
    %78 = arith.divf %76, %77 : vector<8x32xf32>
    %79 = vector.extract_strided_slice %72 {offsets = [0, 32], sizes = [8, 32], strides = [1, 1]} : vector<8x128xf32> to vector<8x32xf32>
    %80 = arith.negf %79 : vector<8x32xf32>
    %81 = math.exp %80 : vector<8x32xf32>
    %cst_26 = arith.constant 1.000000e+00 : f32
    %82 = vector.broadcast %cst_26 : f32 to vector<8x32xf32>
    %83 = arith.addf %82, %81 : vector<8x32xf32>
    %84 = arith.divf %82, %83 : vector<8x32xf32>
    %85 = vector.extract_strided_slice %72 {offsets = [0, 64], sizes = [8, 32], strides = [1, 1]} : vector<8x128xf32> to vector<8x32xf32>
    %86 = math.tanh %85 : vector<8x32xf32>
    %87 = vector.extract_strided_slice %72 {offsets = [0, 96], sizes = [8, 32], strides = [1, 1]} : vector<8x128xf32> to vector<8x32xf32>
    %88 = arith.negf %87 : vector<8x32xf32>
    %89 = math.exp %88 : vector<8x32xf32>
    %cst_27 = arith.constant 1.000000e+00 : f32
    %90 = vector.broadcast %cst_27 : f32 to vector<8x32xf32>
    %91 = arith.addf %90, %89 : vector<8x32xf32>
    %92 = arith.divf %90, %91 : vector<8x32xf32>
    %93 = arith.mulf %84, %64 : vector<8x32xf32>
    %94 = arith.mulf %78, %86 : vector<8x32xf32>
    %95 = arith.addf %93, %94 : vector<8x32xf32>
    %96 = math.tanh %95 : vector<8x32xf32>
    %97 = arith.mulf %92, %96 : vector<8x32xf32>
    %c3_i32 = arith.constant 3 : i32
    %98 = arith.index_cast %c3_i32 : i32 to index
    %c0_28 = arith.constant 0 : index
    %c0_29 = arith.constant 0 : index
    %99 = vector.load %arg1[%98, %c0_28, %c0_29] : memref<8x8x128xf32, #tpu.memory_space<vmem>>, vector<1x8x128xf32>
    %100 = vector.shape_cast %99 : vector<1x8x128xf32> to vector<8x128xf32>
    %c0_30 = arith.constant 0 : index
    %c0_31 = arith.constant 0 : index
    %101 = vector.load %arg2[%c0_30, %c0_31] : memref<32x128xf32, #tpu.memory_space<vmem>>, vector<32x128xf32>
    %cst_32 = arith.constant dense<0.000000e+00> : vector<8x128xf32>
    %102 = tpu.matmul %97, %101, %cst_32 {dimension_numbers = #tpu.dot_dimension_numbers<[1], [0], [0], [1], [0, 0, 1, 1], [], []>} : vector<8x32xf32>, vector<32x128xf32>, vector<8x128xf32> -> vector<8x128xf32>
    %103 = arith.addf %100, %102 : vector<8x128xf32>
    %104 = vector.extract_strided_slice %103 {offsets = [0, 0], sizes = [8, 32], strides = [1, 1]} : vector<8x128xf32> to vector<8x32xf32>
    %105 = arith.negf %104 : vector<8x32xf32>
    %106 = math.exp %105 : vector<8x32xf32>
    %cst_33 = arith.constant 1.000000e+00 : f32
    %107 = vector.broadcast %cst_33 : f32 to vector<8x32xf32>
    %108 = arith.addf %107, %106 : vector<8x32xf32>
    %109 = arith.divf %107, %108 : vector<8x32xf32>
    %110 = vector.extract_strided_slice %103 {offsets = [0, 32], sizes = [8, 32], strides = [1, 1]} : vector<8x128xf32> to vector<8x32xf32>
    %111 = arith.negf %110 : vector<8x32xf32>
    %112 = math.exp %111 : vector<8x32xf32>
    %cst_34 = arith.constant 1.000000e+00 : f32
    %113 = vector.broadcast %cst_34 : f32 to vector<8x32xf32>
    %114 = arith.addf %113, %112 : vector<8x32xf32>
    %115 = arith.divf %113, %114 : vector<8x32xf32>
    %116 = vector.extract_strided_slice %103 {offsets = [0, 64], sizes = [8, 32], strides = [1, 1]} : vector<8x128xf32> to vector<8x32xf32>
    %117 = math.tanh %116 : vector<8x32xf32>
    %118 = vector.extract_strided_slice %103 {offsets = [0, 96], sizes = [8, 32], strides = [1, 1]} : vector<8x128xf32> to vector<8x32xf32>
    %119 = arith.negf %118 : vector<8x32xf32>
    %120 = math.exp %119 : vector<8x32xf32>
    %cst_35 = arith.constant 1.000000e+00 : f32
    %121 = vector.broadcast %cst_35 : f32 to vector<8x32xf32>
    %122 = arith.addf %121, %120 : vector<8x32xf32>
    %123 = arith.divf %121, %122 : vector<8x32xf32>
    %124 = arith.mulf %115, %95 : vector<8x32xf32>
    %125 = arith.mulf %109, %117 : vector<8x32xf32>
    %126 = arith.addf %124, %125 : vector<8x32xf32>
    %127 = math.tanh %126 : vector<8x32xf32>
    %128 = arith.mulf %123, %127 : vector<8x32xf32>
    %c4_i32 = arith.constant 4 : i32
    %129 = arith.index_cast %c4_i32 : i32 to index
    %c0_36 = arith.constant 0 : index
    %c0_37 = arith.constant 0 : index
    %130 = vector.load %arg1[%129, %c0_36, %c0_37] : memref<8x8x128xf32, #tpu.memory_space<vmem>>, vector<1x8x128xf32>
    %131 = vector.shape_cast %130 : vector<1x8x128xf32> to vector<8x128xf32>
    %c0_38 = arith.constant 0 : index
    %c0_39 = arith.constant 0 : index
    %132 = vector.load %arg2[%c0_38, %c0_39] : memref<32x128xf32, #tpu.memory_space<vmem>>, vector<32x128xf32>
    %cst_40 = arith.constant dense<0.000000e+00> : vector<8x128xf32>
    %133 = tpu.matmul %128, %132, %cst_40 {dimension_numbers = #tpu.dot_dimension_numbers<[1], [0], [0], [1], [0, 0, 1, 1], [], []>} : vector<8x32xf32>, vector<32x128xf32>, vector<8x128xf32> -> vector<8x128xf32>
    %134 = arith.addf %131, %133 : vector<8x128xf32>
    %135 = vector.extract_strided_slice %134 {offsets = [0, 0], sizes = [8, 32], strides = [1, 1]} : vector<8x128xf32> to vector<8x32xf32>
    %136 = arith.negf %135 : vector<8x32xf32>
    %137 = math.exp %136 : vector<8x32xf32>
    %cst_41 = arith.constant 1.000000e+00 : f32
    %138 = vector.broadcast %cst_41 : f32 to vector<8x32xf32>
    %139 = arith.addf %138, %137 : vector<8x32xf32>
    %140 = arith.divf %138, %139 : vector<8x32xf32>
    %141 = vector.extract_strided_slice %134 {offsets = [0, 32], sizes = [8, 32], strides = [1, 1]} : vector<8x128xf32> to vector<8x32xf32>
    %142 = arith.negf %141 : vector<8x32xf32>
    %143 = math.exp %142 : vector<8x32xf32>
    %cst_42 = arith.constant 1.000000e+00 : f32
    %144 = vector.broadcast %cst_42 : f32 to vector<8x32xf32>
    %145 = arith.addf %144, %143 : vector<8x32xf32>
    %146 = arith.divf %144, %145 : vector<8x32xf32>
    %147 = vector.extract_strided_slice %134 {offsets = [0, 64], sizes = [8, 32], strides = [1, 1]} : vector<8x128xf32> to vector<8x32xf32>
    %148 = math.tanh %147 : vector<8x32xf32>
    %149 = vector.extract_strided_slice %134 {offsets = [0, 96], sizes = [8, 32], strides = [1, 1]} : vector<8x128xf32> to vector<8x32xf32>
    %150 = arith.negf %149 : vector<8x32xf32>
    %151 = math.exp %150 : vector<8x32xf32>
    %cst_43 = arith.constant 1.000000e+00 : f32
    %152 = vector.broadcast %cst_43 : f32 to vector<8x32xf32>
    %153 = arith.addf %152, %151 : vector<8x32xf32>
    %154 = arith.divf %152, %153 : vector<8x32xf32>
    %155 = arith.mulf %146, %126 : vector<8x32xf32>
    %156 = arith.mulf %140, %148 : vector<8x32xf32>
    %157 = arith.addf %155, %156 : vector<8x32xf32>
    %158 = math.tanh %157 : vector<8x32xf32>
    %159 = arith.mulf %154, %158 : vector<8x32xf32>
    %c5_i32 = arith.constant 5 : i32
    %160 = arith.index_cast %c5_i32 : i32 to index
    %c0_44 = arith.constant 0 : index
    %c0_45 = arith.constant 0 : index
    %161 = vector.load %arg1[%160, %c0_44, %c0_45] : memref<8x8x128xf32, #tpu.memory_space<vmem>>, vector<1x8x128xf32>
    %162 = vector.shape_cast %161 : vector<1x8x128xf32> to vector<8x128xf32>
    %c0_46 = arith.constant 0 : index
    %c0_47 = arith.constant 0 : index
    %163 = vector.load %arg2[%c0_46, %c0_47] : memref<32x128xf32, #tpu.memory_space<vmem>>, vector<32x128xf32>
    %cst_48 = arith.constant dense<0.000000e+00> : vector<8x128xf32>
    %164 = tpu.matmul %159, %163, %cst_48 {dimension_numbers = #tpu.dot_dimension_numbers<[1], [0], [0], [1], [0, 0, 1, 1], [], []>} : vector<8x32xf32>, vector<32x128xf32>, vector<8x128xf32> -> vector<8x128xf32>
    %165 = arith.addf %162, %164 : vector<8x128xf32>
    %166 = vector.extract_strided_slice %165 {offsets = [0, 0], sizes = [8, 32], strides = [1, 1]} : vector<8x128xf32> to vector<8x32xf32>
    %167 = arith.negf %166 : vector<8x32xf32>
    %168 = math.exp %167 : vector<8x32xf32>
    %cst_49 = arith.constant 1.000000e+00 : f32
    %169 = vector.broadcast %cst_49 : f32 to vector<8x32xf32>
    %170 = arith.addf %169, %168 : vector<8x32xf32>
    %171 = arith.divf %169, %170 : vector<8x32xf32>
    %172 = vector.extract_strided_slice %165 {offsets = [0, 32], sizes = [8, 32], strides = [1, 1]} : vector<8x128xf32> to vector<8x32xf32>
    %173 = arith.negf %172 : vector<8x32xf32>
    %174 = math.exp %173 : vector<8x32xf32>
    %cst_50 = arith.constant 1.000000e+00 : f32
    %175 = vector.broadcast %cst_50 : f32 to vector<8x32xf32>
    %176 = arith.addf %175, %174 : vector<8x32xf32>
    %177 = arith.divf %175, %176 : vector<8x32xf32>
    %178 = vector.extract_strided_slice %165 {offsets = [0, 64], sizes = [8, 32], strides = [1, 1]} : vector<8x128xf32> to vector<8x32xf32>
    %179 = math.tanh %178 : vector<8x32xf32>
    %180 = vector.extract_strided_slice %165 {offsets = [0, 96], sizes = [8, 32], strides = [1, 1]} : vector<8x128xf32> to vector<8x32xf32>
    %181 = arith.negf %180 : vector<8x32xf32>
    %182 = math.exp %181 : vector<8x32xf32>
    %cst_51 = arith.constant 1.000000e+00 : f32
    %183 = vector.broadcast %cst_51 : f32 to vector<8x32xf32>
    %184 = arith.addf %183, %182 : vector<8x32xf32>
    %185 = arith.divf %183, %184 : vector<8x32xf32>
    %186 = arith.mulf %177, %157 : vector<8x32xf32>
    %187 = arith.mulf %171, %179 : vector<8x32xf32>
    %188 = arith.addf %186, %187 : vector<8x32xf32>
    %189 = math.tanh %188 : vector<8x32xf32>
    %190 = arith.mulf %185, %189 : vector<8x32xf32>
    %c6_i32 = arith.constant 6 : i32
    %191 = arith.index_cast %c6_i32 : i32 to index
    %c0_52 = arith.constant 0 : index
    %c0_53 = arith.constant 0 : index
    %192 = vector.load %arg1[%191, %c0_52, %c0_53] : memref<8x8x128xf32, #tpu.memory_space<vmem>>, vector<1x8x128xf32>
    %193 = vector.shape_cast %192 : vector<1x8x128xf32> to vector<8x128xf32>
    %c0_54 = arith.constant 0 : index
    %c0_55 = arith.constant 0 : index
    %194 = vector.load %arg2[%c0_54, %c0_55] : memref<32x128xf32, #tpu.memory_space<vmem>>, vector<32x128xf32>
    %cst_56 = arith.constant dense<0.000000e+00> : vector<8x128xf32>
    %195 = tpu.matmul %190, %194, %cst_56 {dimension_numbers = #tpu.dot_dimension_numbers<[1], [0], [0], [1], [0, 0, 1, 1], [], []>} : vector<8x32xf32>, vector<32x128xf32>, vector<8x128xf32> -> vector<8x128xf32>
    %196 = arith.addf %193, %195 : vector<8x128xf32>
    %197 = vector.extract_strided_slice %196 {offsets = [0, 0], sizes = [8, 32], strides = [1, 1]} : vector<8x128xf32> to vector<8x32xf32>
    %198 = arith.negf %197 : vector<8x32xf32>
    %199 = math.exp %198 : vector<8x32xf32>
    %cst_57 = arith.constant 1.000000e+00 : f32
    %200 = vector.broadcast %cst_57 : f32 to vector<8x32xf32>
    %201 = arith.addf %200, %199 : vector<8x32xf32>
    %202 = arith.divf %200, %201 : vector<8x32xf32>
    %203 = vector.extract_strided_slice %196 {offsets = [0, 32], sizes = [8, 32], strides = [1, 1]} : vector<8x128xf32> to vector<8x32xf32>
    %204 = arith.negf %203 : vector<8x32xf32>
    %205 = math.exp %204 : vector<8x32xf32>
    %cst_58 = arith.constant 1.000000e+00 : f32
    %206 = vector.broadcast %cst_58 : f32 to vector<8x32xf32>
    %207 = arith.addf %206, %205 : vector<8x32xf32>
    %208 = arith.divf %206, %207 : vector<8x32xf32>
    %209 = vector.extract_strided_slice %196 {offsets = [0, 64], sizes = [8, 32], strides = [1, 1]} : vector<8x128xf32> to vector<8x32xf32>
    %210 = math.tanh %209 : vector<8x32xf32>
    %211 = vector.extract_strided_slice %196 {offsets = [0, 96], sizes = [8, 32], strides = [1, 1]} : vector<8x128xf32> to vector<8x32xf32>
    %212 = arith.negf %211 : vector<8x32xf32>
    %213 = math.exp %212 : vector<8x32xf32>
    %cst_59 = arith.constant 1.000000e+00 : f32
    %214 = vector.broadcast %cst_59 : f32 to vector<8x32xf32>
    %215 = arith.addf %214, %213 : vector<8x32xf32>
    %216 = arith.divf %214, %215 : vector<8x32xf32>
    %217 = arith.mulf %208, %188 : vector<8x32xf32>
    %218 = arith.mulf %202, %210 : vector<8x32xf32>
    %219 = arith.addf %217, %218 : vector<8x32xf32>
    %220 = math.tanh %219 : vector<8x32xf32>
    %221 = arith.mulf %216, %220 : vector<8x32xf32>
    %c7_i32 = arith.constant 7 : i32
    %222 = arith.index_cast %c7_i32 : i32 to index
    %c0_60 = arith.constant 0 : index
    %c0_61 = arith.constant 0 : index
    %223 = vector.load %arg1[%222, %c0_60, %c0_61] : memref<8x8x128xf32, #tpu.memory_space<vmem>>, vector<1x8x128xf32>
    %224 = vector.shape_cast %223 : vector<1x8x128xf32> to vector<8x128xf32>
    %c0_62 = arith.constant 0 : index
    %c0_63 = arith.constant 0 : index
    %225 = vector.load %arg2[%c0_62, %c0_63] : memref<32x128xf32, #tpu.memory_space<vmem>>, vector<32x128xf32>
    %cst_64 = arith.constant dense<0.000000e+00> : vector<8x128xf32>
    %226 = tpu.matmul %221, %225, %cst_64 {dimension_numbers = #tpu.dot_dimension_numbers<[1], [0], [0], [1], [0, 0, 1, 1], [], []>} : vector<8x32xf32>, vector<32x128xf32>, vector<8x128xf32> -> vector<8x128xf32>
    %227 = arith.addf %224, %226 : vector<8x128xf32>
    %228 = vector.extract_strided_slice %227 {offsets = [0, 0], sizes = [8, 32], strides = [1, 1]} : vector<8x128xf32> to vector<8x32xf32>
    %229 = arith.negf %228 : vector<8x32xf32>
    %230 = math.exp %229 : vector<8x32xf32>
    %cst_65 = arith.constant 1.000000e+00 : f32
    %231 = vector.broadcast %cst_65 : f32 to vector<8x32xf32>
    %232 = arith.addf %231, %230 : vector<8x32xf32>
    %233 = arith.divf %231, %232 : vector<8x32xf32>
    %234 = vector.extract_strided_slice %227 {offsets = [0, 32], sizes = [8, 32], strides = [1, 1]} : vector<8x128xf32> to vector<8x32xf32>
    %235 = arith.negf %234 : vector<8x32xf32>
    %236 = math.exp %235 : vector<8x32xf32>
    %cst_66 = arith.constant 1.000000e+00 : f32
    %237 = vector.broadcast %cst_66 : f32 to vector<8x32xf32>
    %238 = arith.addf %237, %236 : vector<8x32xf32>
    %239 = arith.divf %237, %238 : vector<8x32xf32>
    %240 = vector.extract_strided_slice %227 {offsets = [0, 64], sizes = [8, 32], strides = [1, 1]} : vector<8x128xf32> to vector<8x32xf32>
    %241 = math.tanh %240 : vector<8x32xf32>
    %242 = vector.extract_strided_slice %227 {offsets = [0, 96], sizes = [8, 32], strides = [1, 1]} : vector<8x128xf32> to vector<8x32xf32>
    %243 = arith.negf %242 : vector<8x32xf32>
    %244 = math.exp %243 : vector<8x32xf32>
    %cst_67 = arith.constant 1.000000e+00 : f32
    %245 = vector.broadcast %cst_67 : f32 to vector<8x32xf32>
    %246 = arith.addf %245, %244 : vector<8x32xf32>
    %247 = arith.divf %245, %246 : vector<8x32xf32>
    %248 = arith.mulf %239, %219 : vector<8x32xf32>
    %249 = arith.mulf %233, %241 : vector<8x32xf32>
    %250 = arith.addf %248, %249 : vector<8x32xf32>
    %251 = math.tanh %250 : vector<8x32xf32>
    %252 = arith.mulf %247, %251 : vector<8x32xf32>
    %c8_i32 = arith.constant 8 : i32
    %c0_68 = arith.constant 0 : index
    %c0_69 = arith.constant 0 : index
    %253 = vector.load %arg3[%c0_68, %c0_69] : memref<8x32xf32, #tpu.memory_space<vmem>>, vector<8x32xf32>
    tpu.vector_store %arg3[%c0_68, %c0_69], %252 {strides = array<i32>} : memref<8x32xf32, #tpu.memory_space<vmem>>, vector<8x32xf32>,
    %c0_70 = arith.constant 0 : index
    %c0_71 = arith.constant 0 : index
    %254 = vector.load %arg4[%c0_70, %c0_71] : memref<8x32xf32, #tpu.memory_space<vmem>>, vector<8x32xf32>
    tpu.vector_store %arg4[%c0_70, %c0_71], %250 {strides = array<i32>} : memref<8x32xf32, #tpu.memory_space<vmem>>, vector<8x32xf32>,
    return
  }
  func.func @transform_0(%arg0: i32) -> (i32, i32, i32) {
    %c0_i32 = arith.constant 0 : i32
    %c0_i32_0 = arith.constant 0 : i32
    %c0_i32_1 = arith.constant 0 : i32
    return %arg0, %c0_i32, %c0_i32_0 : i32, i32, i32
  }
  func.func @transform_1(%arg0: i32) -> (i32, i32) {
    %c0_i32 = arith.constant 0 : i32
    %c0_i32_0 = arith.constant 0 : i32
    %c0_i32_1 = arith.constant 0 : i32
    return %c0_i32, %c0_i32_0 : i32, i32
  }
  func.func @transform_2(%arg0: i32) -> (i32, i32) {
    %c0_i32 = arith.constant 0 : i32
    %c0_i32_0 = arith.constant 0 : i32
    %c0_i32_1 = arith.constant 0 : i32
    return %c0_i32, %c0_i32_0 : i32, i32
  }
  func.func @transform_3(%arg0: i32) -> (i32, i32) {
    %c0_i32 = arith.constant 0 : i32
    %c0_i32_0 = arith.constant 0 : i32
    %c0_i32_1 = arith.constant 0 : i32
    return %c0_i32, %c0_i32_0 : i32, i32
  }
}

</mosaic_0001>

<llo_original>
// kernel: encoder_forward.2
$region0: #{encoder_forward.2}
  #allocation0 [shape = 'u32[]', space=smem, size = 0x4, offset = 0x4, fixed_abs, tag = 'smem constant byte address 0x4 - core index']
  #allocation1 [shape = 'u32[144,128]{1,0:T(1,128)}', space=vmem, size = 0x12000, scoped, tag = 'internal scratch']
  %s0 = inlined_call_operand.vmem [shape: f32[64,16], index: 0, kind: input, shape index: {}]
  %s1 = inlined_call_operand.vmem [shape: f32[16,128], index: 1, kind: input, shape index: {}]
  %s2 = inlined_call_operand.vmem [shape: f32[1,128], index: 2, kind: input, shape index: {}]
  %s3 = inlined_call_operand.vmem [shape: f32[64,128], index: 3, kind: output, shape index: {}]
  %s4 = sld [smem:[#allocation0]]
  $region22: #{encoder_forward.2} parent=0
    _
  %s6 = ssub.s32 1, %s4
  %s7 = scalar_select 0, %s6, %s4
  // Predicated region
  $region2: #{encoder_forward.2} parent=0 // pred_check
    _
  $region3: #{encoder_forward.2} parent=0 // pred_check_branch
    %9 = sbr.rel (0) target = $region5
  $region4: #{encoder_forward.2} parent=0 // pred_region
    _
  $region5: #{encoder_forward.2} parent=0 // pred_fallthru
    _
  // Predicated region
  $region6: #{encoder_forward.2} parent=0 // pred_check
    _
  $region7: #{encoder_forward.2} parent=0 // pred_check_branch
    %11 = sbr.rel (0) target = $region9
  $region8: #{encoder_forward.2} parent=0 // pred_region
    _
  $region9: #{encoder_forward.2} parent=0 // pred_fallthru
    _
  // Predicated region
  $region10: #{encoder_forward.2} parent=0 // pred_check
    _
  $region11: #{encoder_forward.2} parent=0 // pred_check_branch
    %13 = sbr.rel (0) target = $region13
  $region12: #{encoder_forward.2} parent=0 // pred_region
    _
  $region13: #{encoder_forward.2} parent=0 // pred_fallthru
    _
  %v14 = vld [vmem:[%s0] sm:$0xff]
  %v15 = vld [vmem:[%s0 + $0x8] sm:$0xff]
  %v16 = vld [vmem:[%s0 + $0x10] sm:$0xff]
  %v17 = vld [vmem:[%s0 + $0x18] sm:$0xff]
  %v18 = vld [vmem:[%s0 + $0x20] sm:$0xff]
  %v19 = vld [vmem:[%s0 + $0x28] sm:$0xff]
  %v20 = vld [vmem:[%s0 + $0x30] sm:$0xff]
  %v21 = vld [vmem:[%s0 + $0x38] sm:$0xff]
  %v22 = vld [vmem:[%s1] sm:$0xff]
  %v23 = vld [vmem:[%s1 + $0x8] sm:$0xff]
  %v24 = vld [vmem:[%s2] sm:$0x1]
  %v26 = vlaneseq
  %v27 = vshrl.u32 %v26, 7
  %v28 = vsub.s32 0, %v27
  %v29 = vrot.slane %v24, %v28
  %vm31 = vcmask 130048
  %v33 = vsel %vm31, %v14, 0
  %v36 = vsel %vm31, %v15, 0
  %v39 = vsel %vm31, %v16, 0
  %v42 = vsel %vm31, %v17, 0
  %v45 = vsel %vm31, %v18, 0
  %v48 = vsel %vm31, %v19, 0
  %v51 = vsel %vm31, %v20, 0
  %v54 = vsel %vm31, %v21, 0
  %56 = vmatprep.subr.mxu0 0.0
  %57 = vmatpush1.msra.mxu0 %v22
  %58 = vmatprep.subr.mxu0 0.0
  %59 = vmatpush1.msra.mxu0 %v23
  %60 = vmatprep.subr.mxu0 0.0
  %61 = vmatpush1.msra.mxu0 0.0
  %62 = vmatprep.subr.mxu0 0.0
  %63 = vmatpush1.msra.mxu0 0.0
  %64 = vmatprep.subr.mxu0 0.0
  %65 = vmatpush1.msra.mxu0 0.0
  %66 = vmatprep.subr.mxu0 0.0
  %67 = vmatpush1.msra.mxu0 0.0
  %68 = vmatprep.subr.mxu0 0.0
  %69 = vmatpush1.msra.mxu0 0.0
  %70 = vmatprep.subr.mxu0 0.0
  %71 = vmatpush1.msra.mxu0 0.0
  %72 = vmatprep.subr.mxu0 0.0
  %73 = vmatpush1.msra.mxu0 0.0
  %74 = vmatprep.subr.mxu0 0.0
  %75 = vmatpush1.msra.mxu0 0.0
  %76 = vmatprep.subr.mxu0 0.0
  %77 = vmatpush1.msra.mxu0 0.0
  %78 = vmatprep.subr.mxu0 0.0
  %79 = vmatpush1.msra.mxu0 0.0
  %80 = vmatprep.subr.mxu0 0.0
  %81 = vmatpush1.msra.mxu0 0.0
  %82 = vmatprep.subr.mxu0 0.0
  %83 = vmatpush1.msra.mxu0 0.0
  %84 = vmatprep.subr.mxu0 0.0
  %85 = vmatpush1.msra.mxu0 0.0
  %86 = vmatprep.subr.mxu0 0.0
  %87 = vmatpush1.msra.mxu0 0.0
  %88 = vmatprep.subr.mxu0 0.0
  %89 = vmatpush1.msra.mxu0 0.0
  %90 = vmatprep.subr.mxu0 0.0
  %91 = vmatpush1.msra.mxu0 0.0
  %92 = vmatprep.subr.mxu0 0.0
  %93 = vmatpush1.msra.mxu0 0.0
  %94 = vmatprep.subr.mxu0 0.0
  %95 = vmatpush1.msra.mxu0 0.0
  %96 = vmatprep.subr.mxu0 0.0
  %97 = vmatpush1.msra.mxu0 0.0
  %98 = vmatprep.subr.mxu0 0.0
  %99 = vmatpush1.msra.mxu0 0.0
  %100 = vmatprep.subr.mxu0 0.0
  %101 = vmatpush1.msra.mxu0 0.0
  %102 = vmatprep.subr.mxu0 0.0
  %103 = vmatpush1.msra.mxu0 0.0
  %104 = vmatprep.subr.mxu0 0.0
  %105 = vmatpush1.msra.mxu0 0.0
  %106 = vmatprep.subr.mxu0 0.0
  %107 = vmatpush1.msra.mxu0 0.0
  %108 = vmatprep.subr.mxu0 0.0
  %109 = vmatpush1.msra.mxu0 0.0
  %110 = vmatprep.subr.mxu0 0.0
  %111 = vmatpush1.msra.mxu0 0.0
  %112 = vmatprep.subr.mxu0 0.0
  %113 = vmatpush1.msra.mxu0 0.0
  %114 = vmatprep.subr.mxu0 0.0
  %115 = vmatpush1.msra.mxu0 0.0
  %116 = vmatprep.subr.mxu0 0.0
  %117 = vmatpush1.msra.mxu0 0.0
  %118 = vmatprep.subr.mxu0 0.0
  %119 = vmatpush1.msra.mxu0 0.0
  %120 = vmatprep.mubr.f32.mxu0 0.0
  %121 = vmatmul.mubr.f32.gmra.mrb[0].mxu0 %v33
  %v122 = vpop.f32.mrb[0].mxu0
  %v123 = vadd.f32 %v29, %v122
  %v124 = vpop.f32.mrb[0].mxu0
  %125 = vmatprep.mubr.f32.mxu0 0.0
  %126 = vmatmul.mubr.f32.gmra.mrb[0].mxu0 %v36
  %v127 = vpop.f32.mrb[0].mxu0
  %v128 = vadd.f32 %v29, %v127
  %v129 = vpop.f32.mrb[0].mxu0
  %130 = vmatprep.mubr.f32.mxu0 0.0
  %131 = vmatmul.mubr.f32.gmra.mrb[0].mxu0 %v39
  %v132 = vpop.f32.mrb[0].mxu0
  %v133 = vadd.f32 %v29, %v132
  %v134 = vpop.f32.mrb[0].mxu0
  %135 = vmatprep.mubr.f32.mxu0 0.0
  %136 = vmatmul.mubr.f32.gmra.mrb[0].mxu0 %v42
  %v137 = vpop.f32.mrb[0].mxu0
  %v138 = vadd.f32 %v29, %v137
  %v139 = vpop.f32.mrb[0].mxu0
  %140 = vmatprep.mubr.f32.mxu0 0.0
  %141 = vmatmul.mubr.f32.gmra.mrb[0].mxu0 %v45
  %v142 = vpop.f32.mrb[0].mxu0
  %v143 = vadd.f32 %v29, %v142
  %v144 = vpop.f32.mrb[0].mxu0
  %145 = vmatprep.mubr.f32.mxu0 0.0
  %146 = vmatmul.mubr.f32.gmra.mrb[0].mxu0 %v48
  %v147 = vpop.f32.mrb[0].mxu0
  %v148 = vadd.f32 %v29, %v147
  %v149 = vpop.f32.mrb[0].mxu0
  %150 = vmatprep.mubr.f32.mxu0 0.0
  %151 = vmatmul.mubr.f32.gmra.mrb[0].mxu0 %v51
  %v152 = vpop.f32.mrb[0].mxu0
  %v153 = vadd.f32 %v29, %v152
  %v154 = vpop.f32.mrb[0].mxu0
  %155 = vmatprep.mubr.f32.mxu0 0.0
  %156 = vmatmul.mubr.f32.gmra.mrb[0].mxu0 %v54
  %v157 = vpop.f32.mrb[0].mxu0
  %v158 = vadd.f32 %v29, %v157
  %v159 = vpop.f32.mrb[0].mxu0
  %160 = vdwg.mxu0
  %161 = vst [vmem:[%s3] sm:$0xff] %v123
  %162 = vst [vmem:[%s3 + $0x8] sm:$0xff] %v128
  %163 = vst [vmem:[%s3 + $0x10] sm:$0xff] %v133
  %164 = vst [vmem:[%s3 + $0x18] sm:$0xff] %v138
  %165 = vst [vmem:[%s3 + $0x20] sm:$0xff] %v143
  %166 = vst [vmem:[%s3 + $0x28] sm:$0xff] %v148
  %167 = vst [vmem:[%s3 + $0x30] sm:$0xff] %v153
  %168 = vst [vmem:[%s3 + $0x38] sm:$0xff] %v158
  // Predicated region
  $region14: #{encoder_forward.2} parent=0 // pred_check
    _
  $region15: #{encoder_forward.2} parent=0 // pred_check_branch
    %170 = sbr.rel (0) target = $region17
  $region16: #{encoder_forward.2} parent=0 // pred_region
    _
  $region17: #{encoder_forward.2} parent=0 // pred_fallthru
    _
  // Predicated region
  $region18: #{encoder_forward.2} parent=0 // pred_check
    _
  $region19: #{encoder_forward.2} parent=0 // pred_check_branch
    %172 = sbr.rel (0) target = $region21
  $region20: #{encoder_forward.2} parent=0 // pred_region
    _
  $region21: #{encoder_forward.2} parent=0 // pred_fallthru
    _

// kernel: encoder_forward.3
$region0: #{encoder_forward.3}
  #allocation0 [shape = 'u32[]', space=smem, size = 0x4, offset = 0x4, fixed_abs, tag = 'smem constant byte address 0x4 - core index']
  #allocation1 [shape = 'u32[144,128]{1,0:T(1,128)}', space=vmem, size = 0x12000, scoped, tag = 'internal scratch']
  %s0 = inlined_call_operand.vmem [shape: f32[8,8,128], index: 0, kind: input, shape index: {}]
  %s1 = inlined_call_operand.vmem [shape: f32[32,128], index: 1, kind: input, shape index: {}]
  %s2 = inlined_call_operand.vmem [shape: f32[8,32], index: 2, kind: output, shape index: {0}]
  %s3 = inlined_call_operand.vmem [shape: f32[8,32], index: 3, kind: output, shape index: {1}]
  %4 = xla_tuple %s2, %s3
  %s5 = sld [smem:[#allocation0]]
  $region30: #{encoder_forward.3} parent=0
    _
  %s7 = ssub.s32 1, %s5
  %s8 = scalar_select 0, %s7, %s5
  // Predicated region
  $region2: #{encoder_forward.3} parent=0 // pred_check
    _
  $region3: #{encoder_forward.3} parent=0 // pred_check_branch
    %10 = sbr.rel (0) target = $region5
  $region4: #{encoder_forward.3} parent=0 // pred_region
    _
  $region5: #{encoder_forward.3} parent=0 // pred_fallthru
    _
  // Predicated region
  $region6: #{encoder_forward.3} parent=0 // pred_check
    _
  $region7: #{encoder_forward.3} parent=0 // pred_check_branch
    %12 = sbr.rel (0) target = $region9
  $region8: #{encoder_forward.3} parent=0 // pred_region
    _
  $region9: #{encoder_forward.3} parent=0 // pred_fallthru
    _
  %p13 = scmp.eq.s32.totalorder 0, 0
  // Predicated region
  $region10: #{encoder_forward.3} parent=0 // pred_check
    %p14 = pneg %p13
  $region11: #{encoder_forward.3} parent=0 // pred_check_branch
    %16 = sbr.rel (%p14) target = $region13
  $region12: #{encoder_forward.3} parent=0 // pred_region
    %vm17 = vcmask 261120
    %18 = vst.msk [vmem:[%s2] sm:$0xff] %vm17, 0.0
    %19 = vst.msk [vmem:[%s3] sm:$0xff] %vm17, 0.0
  $region13: #{encoder_forward.3} parent=0 // pred_fallthru
    _
  %v20 = vld [vmem:[%s2] sm:$0xff]
  %v21 = vld [vmem:[%s3] sm:$0xff]
  %v22 = vld [vmem:[%s0] sm:$0xff]
  %v23 = vld [vmem:[%s1] sm:$0xff]
  %v24 = vld [vmem:[%s1 + $0x8] sm:$0xff]
  %v25 = vld [vmem:[%s1 + $0x10] sm:$0xff]
  %v26 = vld [vmem:[%s1 + $0x18] sm:$0xff]
  %vm27 = vcmask 261120
  %v29 = vsel %vm27, %v20, 0
  %31 = vmatprep.subr.mxu0 0.0
  %32 = vmatpush1.msra.mxu0 %v23
  %33 = vmatprep.subr.mxu0 0.0
  %34 = vmatpush1.msra.mxu0 %v24
  %35 = vmatprep.subr.mxu0 0.0
  %36 = vmatpush1.msra.mxu0 %v25
  %37 = vmatprep.subr.mxu0 0.0
  %38 = vmatpush1.msra.mxu0 %v26
  %39 = vmatprep.subr.mxu0 0.0
  %40 = vmatpush1.msra.mxu0 0.0
  %41 = vmatprep.subr.mxu0 0.0
  %42 = vmatpush1.msra.mxu0 0.0
  %43 = vmatprep.subr.mxu0 0.0
  %44 = vmatpush1.msra.mxu0 0.0
  %45 = vmatprep.subr.mxu0 0.0
  %46 = vmatpush1.msra.mxu0 0.0
  %47 = vmatprep.subr.mxu0 0.0
  %48 = vmatpush1.msra.mxu0 0.0
  %49 = vmatprep.subr.mxu0 0.0
  %50 = vmatpush1.msra.mxu0 0.0
  %51 = vmatprep.subr.mxu0 0.0
  %52 = vmatpush1.msra.mxu0 0.0
  %53 = vmatprep.subr.mxu0 0.0
  %54 = vmatpush1.msra.mxu0 0.0
  %55 = vmatprep.subr.mxu0 0.0
  %56 = vmatpush1.msra.mxu0 0.0
  %57 = vmatprep.subr.mxu0 0.0
  %58 = vmatpush1.msra.mxu0 0.0
  %59 = vmatprep.subr.mxu0 0.0
  %60 = vmatpush1.msra.mxu0 0.0
  %61 = vmatprep.subr.mxu0 0.0
  %62 = vmatpush1.msra.mxu0 0.0
  %63 = vmatprep.subr.mxu0 0.0
  %64 = vmatpush1.msra.mxu0 0.0
  %65 = vmatprep.subr.mxu0 0.0
  %66 = vmatpush1.msra.mxu0 0.0
  %67 = vmatprep.subr.mxu0 0.0
  %68 = vmatpush1.msra.mxu0 0.0
  %69 = vmatprep.subr.mxu0 0.0
  %70 = vmatpush1.msra.mxu0 0.0
  %71 = vmatprep.subr.mxu0 0.0
  %72 = vmatpush1.msra.mxu0 0.0
  %73 = vmatprep.subr.mxu0 0.0
  %74 = vmatpush1.msra.mxu0 0.0
  %75 = vmatprep.subr.mxu0 0.0
  %76 = vmatpush1.msra.mxu0 0.0
  %77 = vmatprep.subr.mxu0 0.0
  %78 = vmatpush1.msra.mxu0 0.0
  %79 = vmatprep.subr.mxu0 0.0
  %80 = vmatpush1.msra.mxu0 0.0
  %81 = vmatprep.subr.mxu0 0.0
  %82 = vmatpush1.msra.mxu0 0.0
  %83 = vmatprep.subr.mxu0 0.0
  %84 = vmatpush1.msra.mxu0 0.0
  %85 = vmatprep.subr.mxu0 0.0
  %86 = vmatpush1.msra.mxu0 0.0
  %87 = vmatprep.subr.mxu0 0.0
  %88 = vmatpush1.msra.mxu0 0.0
  %89 = vmatprep.subr.mxu0 0.0
  %90 = vmatpush1.msra.mxu0 0.0
  %91 = vmatprep.subr.mxu0 0.0
  %92 = vmatpush1.msra.mxu0 0.0
  %93 = vmatprep.subr.mxu0 0.0
  %94 = vmatpush1.msra.mxu0 0.0
  %95 = vmatprep.mubr.f32.mxu0 0.0
  %96 = vmatmul.mubr.f32.gmra.mrb[0].mxu0 %v29
  %v97 = vpop.f32.mrb[0].mxu0
  %v98 = vadd.f32 0.0, %v97
  %v99 = vpop.f32.mrb[0].mxu0
  %100 = vdwg.mxu0
  %v101 = vadd.f32 %v22, %v98
  %v102 = vxor.u32 %v101, 2147483648
  %v103 = vmul.f32 %v102, 1.442695
  %v104 = vpow.pop %v103
  %v105 = vadd.f32 %v104, 1.0
  %v106 = vrcp.pop %v105
  %v107 = vmul.f32 1.0, %v106
  %v108 = vtanh.pop %v101
  %110 = vrot.lane.b32.xlu0 %v21, 32
  %v111 = vpop.permute.xlu0 %110
  %v113 = vmul.f32 %v107, %v111
  %115 = vrot.lane.b32.xlu0 %v108, 64
  %v116 = vpop.permute.xlu0 %115
  %v118 = vmul.f32 %v107, %v116
  %120 = vrot.lane.b32.xlu0 %v118, 32
  %v121 = vpop.permute.xlu0 %120
  %v123 = vadd.f32 %v113, %v121
  %v124 = vtanh.pop %v123
  %126 = vrot.lane.b32.xlu0 %v124, 64
  %v127 = vpop.permute.xlu0 %126
  %v129 = vmul.f32 %v107, %v127
  %s130 = scalar_lea.vmem %s0, 8
  %v131 = vld [vmem:[%s130] sm:$0xff]
  %133 = vrot.lane.b32.xlu0 %v129, 32
  %v134 = vpop.permute.xlu0 %133
  %v135 = vsel %vm27, %v134, 0
  %137 = vmatprep.subr.mxu0 0.0
  %138 = vmatpush1.msra.mxu0 %v23
  %139 = vmatprep.subr.mxu0 0.0
  %140 = vmatpush1.msra.mxu0 %v24
  %141 = vmatprep.subr.mxu0 0.0
  %142 = vmatpush1.msra.mxu0 %v25
  %143 = vmatprep.subr.mxu0 0.0
  %144 = vmatpush1.msra.mxu0 %v26
  %145 = vmatprep.subr.mxu0 0.0
  %146 = vmatpush1.msra.mxu0 0.0
  %147 = vmatprep.subr.mxu0 0.0
  %148 = vmatpush1.msra.mxu0 0.0
  %149 = vmatprep.subr.mxu0 0.0
  %150 = vmatpush1.msra.mxu0 0.0
  %151 = vmatprep.subr.mxu0 0.0
  %152 = vmatpush1.msra.mxu0 0.0
  %153 = vmatprep.subr.mxu0 0.0
  %154 = vmatpush1.msra.mxu0 0.0
  %155 = vmatprep.subr.mxu0 0.0
  %156 = vmatpush1.msra.mxu0 0.0
  %157 = vmatprep.subr.mxu0 0.0
  %158 = vmatpush1.msra.mxu0 0.0
  %159 = vmatprep.subr.mxu0 0.0
  %160 = vmatpush1.msra.mxu0 0.0
  %161 = vmatprep.subr.mxu0 0.0
  %162 = vmatpush1.msra.mxu0 0.0
  %163 = vmatprep.subr.mxu0 0.0
  %164 = vmatpush1.msra.mxu0 0.0
  %165 = vmatprep.subr.mxu0 0.0
  %166 = vmatpush1.msra.mxu0 0.0
  %167 = vmatprep.subr.mxu0 0.0
  %168 = vmatpush1.msra.mxu0 0.0
  %169 = vmatprep.subr.mxu0 0.0
  %170 = vmatpush1.msra.mxu0 0.0
  %171 = vmatprep.subr.mxu0 0.0
  %172 = vmatpush1.msra.mxu0 0.0
  %173 = vmatprep.subr.mxu0 0.0
  %174 = vmatpush1.msra.mxu0 0.0
  %175 = vmatprep.subr.mxu0 0.0
  %176 = vmatpush1.msra.mxu0 0.0
  %177 = vmatprep.subr.mxu0 0.0
  %178 = vmatpush1.msra.mxu0 0.0
  %179 = vmatprep.subr.mxu0 0.0
  %180 = vmatpush1.msra.mxu0 0.0
  %181 = vmatprep.subr.mxu0 0.0
  %182 = vmatpush1.msra.mxu0 0.0
  %183 = vmatprep.subr.mxu0 0.0
  %184 = vmatpush1.msra.mxu0 0.0
  %185 = vmatprep.subr.mxu0 0.0
  %186 = vmatpush1.msra.mxu0 0.0
  %187 = vmatprep.subr.mxu0 0.0
  %188 = vmatpush1.msra.mxu0 0.0
  %189 = vmatprep.subr.mxu0 0.0
  %190 = vmatpush1.msra.mxu0 0.0
  %191 = vmatprep.subr.mxu0 0.0
  %192 = vmatpush1.msra.mxu0 0.0
  %193 = vmatprep.subr.mxu0 0.0
  %194 = vmatpush1.msra.mxu0 0.0
  %195 = vmatprep.subr.mxu0 0.0
  %196 = vmatpush1.msra.mxu0 0.0
  %197 = vmatprep.subr.mxu0 0.0
  %198 = vmatpush1.msra.mxu0 0.0
  %199 = vmatprep.subr.mxu0 0.0
  %200 = vmatpush1.msra.mxu0 0.0
  %201 = vmatprep.mubr.f32.mxu0 0.0
  %202 = vmatmul.mubr.f32.gmra.mrb[0].mxu0 %v135
  %v203 = vpop.f32.mrb[0].mxu0
  %v204 = vadd.f32 0.0, %v203
  %v205 = vpop.f32.mrb[0].mxu0
  %206 = vdwg.mxu0
  %v207 = vadd.f32 %v131, %v204
  %v208 = vxor.u32 %v207, 2147483648
  %v209 = vmul.f32 %v208, 1.442695
  %v210 = vpow.pop %v209
  %v211 = vadd.f32 %v210, 1.0
  %v212 = vrcp.pop %v211
  %v213 = vmul.f32 1.0, %v212
  %v214 = vtanh.pop %v207
  %v215 = vmul.f32 %v213, %v123
  %217 = vrot.lane.b32.xlu0 %v214, 64
  %v218 = vpop.permute.xlu0 %217
  %v220 = vmul.f32 %v213, %v218
  %222 = vrot.lane.b32.xlu0 %v220, 32
  %v223 = vpop.permute.xlu0 %222
  %v225 = vadd.f32 %v215, %v223
  %v226 = vtanh.pop %v225
  %228 = vrot.lane.b32.xlu0 %v226, 64
  %v229 = vpop.permute.xlu0 %228
  %v231 = vmul.f32 %v213, %v229
  %s232 = scalar_lea.vmem %s0, 16
  %v233 = vld [vmem:[%s232] sm:$0xff]
  %235 = vrot.lane.b32.xlu0 %v231, 32
  %v236 = vpop.permute.xlu0 %235
  %v237 = vsel %vm27, %v236, 0
  %239 = vmatprep.subr.mxu0 0.0
  %240 = vmatpush1.msra.mxu0 %v23
  %241 = vmatprep.subr.mxu0 0.0
  %242 = vmatpush1.msra.mxu0 %v24
  %243 = vmatprep.subr.mxu0 0.0
  %244 = vmatpush1.msra.mxu0 %v25
  %245 = vmatprep.subr.mxu0 0.0
  %246 = vmatpush1.msra.mxu0 %v26
  %247 = vmatprep.subr.mxu0 0.0
  %248 = vmatpush1.msra.mxu0 0.0
  %249 = vmatprep.subr.mxu0 0.0
  %250 = vmatpush1.msra.mxu0 0.0
  %251 = vmatprep.subr.mxu0 0.0
  %252 = vmatpush1.msra.mxu0 0.0
  %253 = vmatprep.subr.mxu0 0.0
  %254 = vmatpush1.msra.mxu0 0.0
  %255 = vmatprep.subr.mxu0 0.0
  %256 = vmatpush1.msra.mxu0 0.0
  %257 = vmatprep.subr.mxu0 0.0
  %258 = vmatpush1.msra.mxu0 0.0
  %259 = vmatprep.subr.mxu0 0.0
  %260 = vmatpush1.msra.mxu0 0.0
  %261 = vmatprep.subr.mxu0 0.0
  %262 = vmatpush1.msra.mxu0 0.0
  %263 = vmatprep.subr.mxu0 0.0
  %264 = vmatpush1.msra.mxu0 0.0
  %265 = vmatprep.subr.mxu0 0.0
  %266 = vmatpush1.msra.mxu0 0.0
  %267 = vmatprep.subr.mxu0 0.0
  %268 = vmatpush1.msra.mxu0 0.0
  %269 = vmatprep.subr.mxu0 0.0
  %270 = vmatpush1.msra.mxu0 0.0
  %271 = vmatprep.subr.mxu0 0.0
  %272 = vmatpush1.msra.mxu0 0.0
  %273 = vmatprep.subr.mxu0 0.0
  %274 = vmatpush1.msra.mxu0 0.0
  %275 = vmatprep.subr.mxu0 0.0
  %276 = vmatpush1.msra.mxu0 0.0
  %277 = vmatprep.subr.mxu0 0.0
  %278 = vmatpush1.msra.mxu0 0.0
  %279 = vmatprep.subr.mxu0 0.0
  %280 = vmatpush1.msra.mxu0 0.0
  %281 = vmatprep.subr.mxu0 0.0
  %282 = vmatpush1.msra.mxu0 0.0
  %283 = vmatprep.subr.mxu0 0.0
  %284 = vmatpush1.msra.mxu0 0.0
  %285 = vmatprep.subr.mxu0 0.0
  %286 = vmatpush1.msra.mxu0 0.0
  %287 = vmatprep.subr.mxu0 0.0
  %288 = vmatpush1.msra.mxu0 0.0
  %289 = vmatprep.subr.mxu0 0.0
  %290 = vmatpush1.msra.mxu0 0.0
  %291 = vmatprep.subr.mxu0 0.0
  %292 = vmatpush1.msra.mxu0 0.0
  %293 = vmatprep.subr.mxu0 0.0
  %294 = vmatpush1.msra.mxu0 0.0
  %295 = vmatprep.subr.mxu0 0.0
  %296 = vmatpush1.msra.mxu0 0.0
  %297 = vmatprep.subr.mxu0 0.0
  %298 = vmatpush1.msra.mxu0 0.0
  %299 = vmatprep.subr.mxu0 0.0
  %300 = vmatpush1.msra.mxu0 0.0
  %301 = vmatprep.subr.mxu0 0.0
  %302 = vmatpush1.msra.mxu0 0.0
  %303 = vmatprep.mubr.f32.mxu0 0.0
  %304 = vmatmul.mubr.f32.gmra.mrb[0].mxu0 %v237
  %v305 = vpop.f32.mrb[0].mxu0
  %v306 = vadd.f32 0.0, %v305
  %v307 = vpop.f32.mrb[0].mxu0
  %308 = vdwg.mxu0
  %v309 = vadd.f32 %v233, %v306
  %v310 = vxor.u32 %v309, 2147483648
  %v311 = vmul.f32 %v310, 1.442695
  %v312 = vpow.pop %v311
  %v313 = vadd.f32 %v312, 1.0
  %v314 = vrcp.pop %v313
  %v315 = vmul.f32 1.0, %v314
  %v316 = vtanh.pop %v309
  %v317 = vmul.f32 %v315, %v225
  %319 = vrot.lane.b32.xlu0 %v316, 64
  %v320 = vpop.permute.xlu0 %319
  %v322 = vmul.f32 %v315, %v320
  %324 = vrot.lane.b32.xlu0 %v322, 32
  %v325 = vpop.permute.xlu0 %324
  %v327 = vadd.f32 %v317, %v325
  %v328 = vtanh.pop %v327
  %330 = vrot.lane.b32.xlu0 %v328, 64
  %v331 = vpop.permute.xlu0 %330
  %v333 = vmul.f32 %v315, %v331
  %s334 = scalar_lea.vmem %s0, 24
  %v335 = vld [vmem:[%s334] sm:$0xff]
  %337 = vrot.lane.b32.xlu0 %v333, 32
  %v338 = vpop.permute.xlu0 %337
  %v339 = vsel %vm27, %v338, 0
  %341 = vmatprep.subr.mxu0 0.0
  %342 = vmatpush1.msra.mxu0 %v23
  %343 = vmatprep.subr.mxu0 0.0
  %344 = vmatpush1.msra.mxu0 %v24
  %345 = vmatprep.subr.mxu0 0.0
  %346 = vmatpush1.msra.mxu0 %v25
  %347 = vmatprep.subr.mxu0 0.0
  %348 = vmatpush1.msra.mxu0 %v26
  %349 = vmatprep.subr.mxu0 0.0
  %350 = vmatpush1.msra.mxu0 0.0
  %351 = vmatprep.subr.mxu0 0.0
  %352 = vmatpush1.msra.mxu0 0.0
  %353 = vmatprep.subr.mxu0 0.0
  %354 = vmatpush1.msra.mxu0 0.0
  %355 = vmatprep.subr.mxu0 0.0
  %356 = vmatpush1.msra.mxu0 0.0
  %357 = vmatprep.subr.mxu0 0.0
  %358 = vmatpush1.msra.mxu0 0.0
  %359 = vmatprep.subr.mxu0 0.0
  %360 = vmatpush1.msra.mxu0 0.0
  %361 = vmatprep.subr.mxu0 0.0
  %362 = vmatpush1.msra.mxu0 0.0
  %363 = vmatprep.subr.mxu0 0.0
  %364 = vmatpush1.msra.mxu0 0.0
  %365 = vmatprep.subr.mxu0 0.0
  %366 = vmatpush1.msra.mxu0 0.0
  %367 = vmatprep.subr.mxu0 0.0
  %368 = vmatpush1.msra.mxu0 0.0
  %369 = vmatprep.subr.mxu0 0.0
  %370 = vmatpush1.msra.mxu0 0.0
  %371 = vmatprep.subr.mxu0 0.0
  %372 = vmatpush1.msra.mxu0 0.0
  %373 = vmatprep.subr.mxu0 0.0
  %374 = vmatpush1.msra.mxu0 0.0
  %375 = vmatprep.subr.mxu0 0.0
  %376 = vmatpush1.msra.mxu0 0.0
  %377 = vmatprep.subr.mxu0 0.0
  %378 = vmatpush1.msra.mxu0 0.0
  %379 = vmatprep.subr.mxu0 0.0
  %380 = vmatpush1.msra.mxu0 0.0
  %381 = vmatprep.subr.mxu0 0.0
  %382 = vmatpush1.msra.mxu0 0.0
  %383 = vmatprep.subr.mxu0 0.0
  %384 = vmatpush1.msra.mxu0 0.0
  %385 = vmatprep.subr.mxu0 0.0
  %386 = vmatpush1.msra.mxu0 0.0
  %387 = vmatprep.subr.mxu0 0.0
  %388 = vmatpush1.msra.mxu0 0.0
  %389 = vmatprep.subr.mxu0 0.0
  %390 = vmatpush1.msra.mxu0 0.0
  %391 = vmatprep.subr.mxu0 0.0
  %392 = vmatpush1.msra.mxu0 0.0
  %393 = vmatprep.subr.mxu0 0.0
  %394 = vmatpush1.msra.mxu0 0.0
  %395 = vmatprep.subr.mxu0 0.0
  %396 = vmatpush1.msra.mxu0 0.0
  %397 = vmatprep.subr.mxu0 0.0
  %398 = vmatpush1.msra.mxu0 0.0
  %399 = vmatprep.subr.mxu0 0.0
  %400 = vmatpush1.msra.mxu0 0.0
  %401 = vmatprep.subr.mxu0 0.0
  %402 = vmatpush1.msra.mxu0 0.0
  %403 = vmatprep.subr.mxu0 0.0
  %404 = vmatpush1.msra.mxu0 0.0
  %405 = vmatprep.mubr.f32.mxu0 0.0
  %406 = vmatmul.mubr.f32.gmra.mrb[0].mxu0 %v339
  %v407 = vpop.f32.mrb[0].mxu0
  %v408 = vadd.f32 0.0, %v407
  %v409 = vpop.f32.mrb[0].mxu0
  %410 = vdwg.mxu0
  %v411 = vadd.f32 %v335, %v408
  %v412 = vxor.u32 %v411, 2147483648
  %v413 = vmul.f32 %v412, 1.442695
  %v414 = vpow.pop %v413
  %v415 = vadd.f32 %v414, 1.0
  %v416 = vrcp.pop %v415
  %v417 = vmul.f32 1.0, %v416
  %v418 = vtanh.pop %v411
  %v419 = vmul.f32 %v417, %v327
  %421 = vrot.lane.b32.xlu0 %v418, 64
  %v422 = vpop.permute.xlu0 %421
  %v424 = vmul.f32 %v417, %v422
  %426 = vrot.lane.b32.xlu0 %v424, 32
  %v427 = vpop.permute.xlu0 %426
  %v429 = vadd.f32 %v419, %v427
  %v430 = vtanh.pop %v429
  %432 = vrot.lane.b32.xlu0 %v430, 64
  %v433 = vpop.permute.xlu0 %432
  %v435 = vmul.f32 %v417, %v433
  %s436 = scalar_lea.vmem %s0, 32
  %v437 = vld [vmem:[%s436] sm:$0xff]
  %439 = vrot.lane.b32.xlu0 %v435, 32
  %v440 = vpop.permute.xlu0 %439
  %v441 = vsel %vm27, %v440, 0
  %443 = vmatprep.subr.mxu0 0.0
  %444 = vmatpush1.msra.mxu0 %v23
  %445 = vmatprep.subr.mxu0 0.0
  %446 = vmatpush1.msra.mxu0 %v24
  %447 = vmatprep.subr.mxu0 0.0
  %448 = vmatpush1.msra.mxu0 %v25
  %449 = vmatprep.subr.mxu0 0.0
  %450 = vmatpush1.msra.mxu0 %v26
  %451 = vmatprep.subr.mxu0 0.0
  %452 = vmatpush1.msra.mxu0 0.0
  %453 = vmatprep.subr.mxu0 0.0
  %454 = vmatpush1.msra.mxu0 0.0
  %455 = vmatprep.subr.mxu0 0.0
  %456 = vmatpush1.msra.mxu0 0.0
  %457 = vmatprep.subr.mxu0 0.0
  %458 = vmatpush1.msra.mxu0 0.0
  %459 = vmatprep.subr.mxu0 0.0
  %460 = vmatpush1.msra.mxu0 0.0
  %461 = vmatprep.subr.mxu0 0.0
  %462 = vmatpush1.msra.mxu0 0.0
  %463 = vmatprep.subr.mxu0 0.0
  %464 = vmatpush1.msra.mxu0 0.0
  %465 = vmatprep.subr.mxu0 0.0
  %466 = vmatpush1.msra.mxu0 0.0
  %467 = vmatprep.subr.mxu0 0.0
  %468 = vmatpush1.msra.mxu0 0.0
  %469 = vmatprep.subr.mxu0 0.0
  %470 = vmatpush1.msra.mxu0 0.0
  %471 = vmatprep.subr.mxu0 0.0
  %472 = vmatpush1.msra.mxu0 0.0
  %473 = vmatprep.subr.mxu0 0.0
  %474 = vmatpush1.msra.mxu0 0.0
  %475 = vmatprep.subr.mxu0 0.0
  %476 = vmatpush1.msra.mxu0 0.0
  %477 = vmatprep.subr.mxu0 0.0
  %478 = vmatpush1.msra.mxu0 0.0
  %479 = vmatprep.subr.mxu0 0.0
  %480 = vmatpush1.msra.mxu0 0.0
  %481 = vmatprep.subr.mxu0 0.0
  %482 = vmatpush1.msra.mxu0 0.0
  %483 = vmatprep.subr.mxu0 0.0
  %484 = vmatpush1.msra.mxu0 0.0
  %485 = vmatprep.subr.mxu0 0.0
  %486 = vmatpush1.msra.mxu0 0.0
  %487 = vmatprep.subr.mxu0 0.0
  %488 = vmatpush1.msra.mxu0 0.0
  %489 = vmatprep.subr.mxu0 0.0
  %490 = vmatpush1.msra.mxu0 0.0
  %491 = vmatprep.subr.mxu0 0.0
  %492 = vmatpush1.msra.mxu0 0.0
  %493 = vmatprep.subr.mxu0 0.0
  %494 = vmatpush1.msra.mxu0 0.0
  %495 = vmatprep.subr.mxu0 0.0
  %496 = vmatpush1.msra.mxu0 0.0
  %497 = vmatprep.subr.mxu0 0.0
  %498 = vmatpush1.msra.mxu0 0.0
  %499 = vmatprep.subr.mxu0 0.0
  %500 = vmatpush1.msra.mxu0 0.0
  %501 = vmatprep.subr.mxu0 0.0
  %502 = vmatpush1.msra.mxu0 0.0
  %503 = vmatprep.subr.mxu0 0.0
  %504 = vmatpush1.msra.mxu0 0.0
  %505 = vmatprep.subr.mxu0 0.0
  %506 = vmatpush1.msra.mxu0 0.0
  %507 = vmatprep.mubr.f32.mxu0 0.0
  %508 = vmatmul.mubr.f32.gmra.mrb[0].mxu0 %v441
  %v509 = vpop.f32.mrb[0].mxu0
  %v510 = vadd.f32 0.0, %v509
  %v511 = vpop.f32.mrb[0].mxu0
  %512 = vdwg.mxu0
  %v513 = vadd.f32 %v437, %v510
  %v514 = vxor.u32 %v513, 2147483648
  %v515 = vmul.f32 %v514, 1.442695
  %v516 = vpow.pop %v515
  %v517 = vadd.f32 %v516, 1.0
  %v518 = vrcp.pop %v517
  %v519 = vmul.f32 1.0, %v518
  %v520 = vtanh.pop %v513
  %v521 = vmul.f32 %v519, %v429
  %523 = vrot.lane.b32.xlu0 %v520, 64
  %v524 = vpop.permute.xlu0 %523
  %v526 = vmul.f32 %v519, %v524
  %528 = vrot.lane.b32.xlu0 %v526, 32
  %v529 = vpop.permute.xlu0 %528
  %v531 = vadd.f32 %v521, %v529
  %v532 = vtanh.pop %v531
  %534 = vrot.lane.b32.xlu0 %v532, 64
  %v535 = vpop.permute.xlu0 %534
  %v537 = vmul.f32 %v519, %v535
  %s538 = scalar_lea.vmem %s0, 40
  %v539 = vld [vmem:[%s538] sm:$0xff]
  %541 = vrot.lane.b32.xlu0 %v537, 32
  %v542 = vpop.permute.xlu0 %541
  %v543 = vsel %vm27, %v542, 0
  %545 = vmatprep.subr.mxu0 0.0
  %546 = vmatpush1.msra.mxu0 %v23
  %547 = vmatprep.subr.mxu0 0.0
  %548 = vmatpush1.msra.mxu0 %v24
  %549 = vmatprep.subr.mxu0 0.0
  %550 = vmatpush1.msra.mxu0 %v25
  %551 = vmatprep.subr.mxu0 0.0
  %552 = vmatpush1.msra.mxu0 %v26
  %553 = vmatprep.subr.mxu0 0.0
  %554 = vmatpush1.msra.mxu0 0.0
  %555 = vmatprep.subr.mxu0 0.0
  %556 = vmatpush1.msra.mxu0 0.0
  %557 = vmatprep.subr.mxu0 0.0
  %558 = vmatpush1.msra.mxu0 0.0
  %559 = vmatprep.subr.mxu0 0.0
  %560 = vmatpush1.msra.mxu0 0.0
  %561 = vmatprep.subr.mxu0 0.0
  %562 = vmatpush1.msra.mxu0 0.0
  %563 = vmatprep.subr.mxu0 0.0
  %564 = vmatpush1.msra.mxu0 0.0
  %565 = vmatprep.subr.mxu0 0.0
  %566 = vmatpush1.msra.mxu0 0.0
  %567 = vmatprep.subr.mxu0 0.0
  %568 = vmatpush1.msra.mxu0 0.0
  %569 = vmatprep.subr.mxu0 0.0
  %570 = vmatpush1.msra.mxu0 0.0
  %571 = vmatprep.subr.mxu0 0.0
  %572 = vmatpush1.msra.mxu0 0.0
  %573 = vmatprep.subr.mxu0 0.0
  %574 = vmatpush1.msra.mxu0 0.0
  %575 = vmatprep.subr.mxu0 0.0
  %576 = vmatpush1.msra.mxu0 0.0
  %577 = vmatprep.subr.mxu0 0.0
  %578 = vmatpush1.msra.mxu0 0.0
  %579 = vmatprep.subr.mxu0 0.0
  %580 = vmatpush1.msra.mxu0 0.0
  %581 = vmatprep.subr.mxu0 0.0
  %582 = vmatpush1.msra.mxu0 0.0
  %583 = vmatprep.subr.mxu0 0.0
  %584 = vmatpush1.msra.mxu0 0.0
  %585 = vmatprep.subr.mxu0 0.0
  %586 = vmatpush1.msra.mxu0 0.0
  %587 = vmatprep.subr.mxu0 0.0
  %588 = vmatpush1.msra.mxu0 0.0
  %589 = vmatprep.subr.mxu0 0.0
  %590 = vmatpush1.msra.mxu0 0.0
  %591 = vmatprep.subr.mxu0 0.0
  %592 = vmatpush1.msra.mxu0 0.0
  %593 = vmatprep.subr.mxu0 0.0
  %594 = vmatpush1.msra.mxu0 0.0
  %595 = vmatprep.subr.mxu0 0.0
  %596 = vmatpush1.msra.mxu0 0.0
  %597 = vmatprep.subr.mxu0 0.0
  %598 = vmatpush1.msra.mxu0 0.0
  %599 = vmatprep.subr.mxu0 0.0
  %600 = vmatpush1.msra.mxu0 0.0
  %601 = vmatprep.subr.mxu0 0.0
  %602 = vmatpush1.msra.mxu0 0.0
  %603 = vmatprep.subr.mxu0 0.0
  %604 = vmatpush1.msra.mxu0 0.0
  %605 = vmatprep.subr.mxu0 0.0
  %606 = vmatpush1.msra.mxu0 0.0
  %607 = vmatprep.subr.mxu0 0.0
  %608 = vmatpush1.msra.mxu0 0.0
  %609 = vmatprep.mubr.f32.mxu0 0.0
  %610 = vmatmul.mubr.f32.gmra.mrb[0].mxu0 %v543
  %v611 = vpop.f32.mrb[0].mxu0
  %v612 = vadd.f32 0.0, %v611
  %v613 = vpop.f32.mrb[0].mxu0
  %614 = vdwg.mxu0
  %v615 = vadd.f32 %v539, %v612
  %v616 = vxor.u32 %v615, 2147483648
  %v617 = vmul.f32 %v616, 1.442695
  %v618 = vpow.pop %v617
  %v619 = vadd.f32 %v618, 1.0
  %v620 = vrcp.pop %v619
  %v621 = vmul.f32 1.0, %v620
  %v622 = vtanh.pop %v615
  %v623 = vmul.f32 %v621, %v531
  %625 = vrot.lane.b32.xlu0 %v622, 64
  %v626 = vpop.permute.xlu0 %625
  %v628 = vmul.f32 %v621, %v626
  %630 = vrot.lane.b32.xlu0 %v628, 32
  %v631 = vpop.permute.xlu0 %630
  %v633 = vadd.f32 %v623, %v631
  %v634 = vtanh.pop %v633
  %636 = vrot.lane.b32.xlu0 %v634, 64
  %v637 = vpop.permute.xlu0 %636
  %v639 = vmul.f32 %v621, %v637
  %s640 = scalar_lea.vmem %s0, 48
  %v641 = vld [vmem:[%s640] sm:$0xff]
  %643 = vrot.lane.b32.xlu0 %v639, 32
  %v644 = vpop.permute.xlu0 %643
  %v645 = vsel %vm27, %v644, 0
  %647 = vmatprep.subr.mxu0 0.0
  %648 = vmatpush1.msra.mxu0 %v23
  %649 = vmatprep.subr.mxu0 0.0
  %650 = vmatpush1.msra.mxu0 %v24
  %651 = vmatprep.subr.mxu0 0.0
  %652 = vmatpush1.msra.mxu0 %v25
  %653 = vmatprep.subr.mxu0 0.0
  %654 = vmatpush1.msra.mxu0 %v26
  %655 = vmatprep.subr.mxu0 0.0
  %656 = vmatpush1.msra.mxu0 0.0
  %657 = vmatprep.subr.mxu0 0.0
  %658 = vmatpush1.msra.mxu0 0.0
  %659 = vmatprep.subr.mxu0 0.0
  %660 = vmatpush1.msra.mxu0 0.0
  %661 = vmatprep.subr.mxu0 0.0
  %662 = vmatpush1.msra.mxu0 0.0
  %663 = vmatprep.subr.mxu0 0.0
  %664 = vmatpush1.msra.mxu0 0.0
  %665 = vmatprep.subr.mxu0 0.0
  %666 = vmatpush1.msra.mxu0 0.0
  %667 = vmatprep.subr.mxu0 0.0
  %668 = vmatpush1.msra.mxu0 0.0
  %669 = vmatprep.subr.mxu0 0.0
  %670 = vmatpush1.msra.mxu0 0.0
  %671 = vmatprep.subr.mxu0 0.0
  %672 = vmatpush1.msra.mxu0 0.0
  %673 = vmatprep.subr.mxu0 0.0
  %674 = vmatpush1.msra.mxu0 0.0
  %675 = vmatprep.subr.mxu0 0.0
  %676 = vmatpush1.msra.mxu0 0.0
  %677 = vmatprep.subr.mxu0 0.0
  %678 = vmatpush1.msra.mxu0 0.0
  %679 = vmatprep.subr.mxu0 0.0
  %680 = vmatpush1.msra.mxu0 0.0
  %681 = vmatprep.subr.mxu0 0.0
  %682 = vmatpush1.msra.mxu0 0.0
  %683 = vmatprep.subr.mxu0 0.0
  %684 = vmatpush1.msra.mxu0 0.0
  %685 = vmatprep.subr.mxu0 0.0
  %686 = vmatpush1.msra.mxu0 0.0
  %687 = vmatprep.subr.mxu0 0.0
  %688 = vmatpush1.msra.mxu0 0.0
  %689 = vmatprep.subr.mxu0 0.0
  %690 = vmatpush1.msra.mxu0 0.0
  %691 = vmatprep.subr.mxu0 0.0
  %692 = vmatpush1.msra.mxu0 0.0
  %693 = vmatprep.subr.mxu0 0.0
  %694 = vmatpush1.msra.mxu0 0.0
  %695 = vmatprep.subr.mxu0 0.0
  %696 = vmatpush1.msra.mxu0 0.0
  %697 = vmatprep.subr.mxu0 0.0
  %698 = vmatpush1.msra.mxu0 0.0
  %699 = vmatprep.subr.mxu0 0.0
  %700 = vmatpush1.msra.mxu0 0.0
  %701 = vmatprep.subr.mxu0 0.0
  %702 = vmatpush1.msra.mxu0 0.0
  %703 = vmatprep.subr.mxu0 0.0
  %704 = vmatpush1.msra.mxu0 0.0
  %705 = vmatprep.subr.mxu0 0.0
  %706 = vmatpush1.msra.mxu0 0.0
  %707 = vmatprep.subr.mxu0 0.0
  %708 = vmatpush1.msra.mxu0 0.0
  %709 = vmatprep.subr.mxu0 0.0
  %710 = vmatpush1.msra.mxu0 0.0
  %711 = vmatprep.mubr.f32.mxu0 0.0
  %712 = vmatmul.mubr.f32.gmra.mrb[0].mxu0 %v645
  %v713 = vpop.f32.mrb[0].mxu0
  %v714 = vadd.f32 0.0, %v713
  %v715 = vpop.f32.mrb[0].mxu0
  %716 = vdwg.mxu0
  %v717 = vadd.f32 %v641, %v714
  %v718 = vxor.u32 %v717, 2147483648
  %v719 = vmul.f32 %v718, 1.442695
  %v720 = vpow.pop %v719
  %v721 = vadd.f32 %v720, 1.0
  %v722 = vrcp.pop %v721
  %v723 = vmul.f32 1.0, %v722
  %v724 = vtanh.pop %v717
  %v725 = vmul.f32 %v723, %v633
  %727 = vrot.lane.b32.xlu0 %v724, 64
  %v728 = vpop.permute.xlu0 %727
  %v730 = vmul.f32 %v723, %v728
  %732 = vrot.lane.b32.xlu0 %v730, 32
  %v733 = vpop.permute.xlu0 %732
  %v735 = vadd.f32 %v725, %v733
  %v736 = vtanh.pop %v735
  %738 = vrot.lane.b32.xlu0 %v736, 64
  %v739 = vpop.permute.xlu0 %738
  %v741 = vmul.f32 %v723, %v739
  %s742 = scalar_lea.vmem %s0, 56
  %v743 = vld [vmem:[%s742] sm:$0xff]
  %745 = vrot.lane.b32.xlu0 %v741, 32
  %v746 = vpop.permute.xlu0 %745
  %v747 = vsel %vm27, %v746, 0
  %749 = vmatprep.subr.mxu0 0.0
  %750 = vmatpush1.msra.mxu0 %v23
  %751 = vmatprep.subr.mxu0 0.0
  %752 = vmatpush1.msra.mxu0 %v24
  %753 = vmatprep.subr.mxu0 0.0
  %754 = vmatpush1.msra.mxu0 %v25
  %755 = vmatprep.subr.mxu0 0.0
  %756 = vmatpush1.msra.mxu0 %v26
  %757 = vmatprep.subr.mxu0 0.0
  %758 = vmatpush1.msra.mxu0 0.0
  %759 = vmatprep.subr.mxu0 0.0
  %760 = vmatpush1.msra.mxu0 0.0
  %761 = vmatprep.subr.mxu0 0.0
  %762 = vmatpush1.msra.mxu0 0.0
  %763 = vmatprep.subr.mxu0 0.0
  %764 = vmatpush1.msra.mxu0 0.0
  %765 = vmatprep.subr.mxu0 0.0
  %766 = vmatpush1.msra.mxu0 0.0
  %767 = vmatprep.subr.mxu0 0.0
  %768 = vmatpush1.msra.mxu0 0.0
  %769 = vmatprep.subr.mxu0 0.0
  %770 = vmatpush1.msra.mxu0 0.0
  %771 = vmatprep.subr.mxu0 0.0
  %772 = vmatpush1.msra.mxu0 0.0
  %773 = vmatprep.subr.mxu0 0.0
  %774 = vmatpush1.msra.mxu0 0.0
  %775 = vmatprep.subr.mxu0 0.0
  %776 = vmatpush1.msra.mxu0 0.0
  %777 = vmatprep.subr.mxu0 0.0
  %778 = vmatpush1.msra.mxu0 0.0
  %779 = vmatprep.subr.mxu0 0.0
  %780 = vmatpush1.msra.mxu0 0.0
  %781 = vmatprep.subr.mxu0 0.0
  %782 = vmatpush1.msra.mxu0 0.0
  %783 = vmatprep.subr.mxu0 0.0
  %784 = vmatpush1.msra.mxu0 0.0
  %785 = vmatprep.subr.mxu0 0.0
  %786 = vmatpush1.msra.mxu0 0.0
  %787 = vmatprep.subr.mxu0 0.0
  %788 = vmatpush1.msra.mxu0 0.0
  %789 = vmatprep.subr.mxu0 0.0
  %790 = vmatpush1.msra.mxu0 0.0
  %791 = vmatprep.subr.mxu0 0.0
  %792 = vmatpush1.msra.mxu0 0.0
  %793 = vmatprep.subr.mxu0 0.0
  %794 = vmatpush1.msra.mxu0 0.0
  %795 = vmatprep.subr.mxu0 0.0
  %796 = vmatpush1.msra.mxu0 0.0
  %797 = vmatprep.subr.mxu0 0.0
  %798 = vmatpush1.msra.mxu0 0.0
  %799 = vmatprep.subr.mxu0 0.0
  %800 = vmatpush1.msra.mxu0 0.0
  %801 = vmatprep.subr.mxu0 0.0
  %802 = vmatpush1.msra.mxu0 0.0
  %803 = vmatprep.subr.mxu0 0.0
  %804 = vmatpush1.msra.mxu0 0.0
  %805 = vmatprep.subr.mxu0 0.0
  %806 = vmatpush1.msra.mxu0 0.0
  %807 = vmatprep.subr.mxu0 0.0
  %808 = vmatpush1.msra.mxu0 0.0
  %809 = vmatprep.subr.mxu0 0.0
  %810 = vmatpush1.msra.mxu0 0.0
  %811 = vmatprep.subr.mxu0 0.0
  %812 = vmatpush1.msra.mxu0 0.0
  %813 = vmatprep.mubr.f32.mxu0 0.0
  %814 = vmatmul.mubr.f32.gmra.mrb[0].mxu0 %v747
  %v815 = vpop.f32.mrb[0].mxu0
  %v816 = vadd.f32 0.0, %v815
  %v817 = vpop.f32.mrb[0].mxu0
  %818 = vdwg.mxu0
  %v819 = vadd.f32 %v743, %v816
  %v820 = vxor.u32 %v819, 2147483648
  %v821 = vmul.f32 %v820, 1.442695
  %v822 = vpow.pop %v821
  %v823 = vadd.f32 %v822, 1.0
  %v824 = vrcp.pop %v823
  %v825 = vmul.f32 1.0, %v824
  %v826 = vtanh.pop %v819
  %v827 = vmul.f32 %v825, %v735
  %829 = vrot.lane.b32.xlu0 %v826, 64
  %v830 = vpop.permute.xlu0 %829
  %v832 = vmul.f32 %v825, %v830
  %834 = vrot.lane.b32.xlu0 %v832, 32
  %v835 = vpop.permute.xlu0 %834
  %v837 = vadd.f32 %v827, %v835
  %v838 = vtanh.pop %v837
  %840 = vrot.lane.b32.xlu0 %v838, 64
  %v841 = vpop.permute.xlu0 %840
  %v843 = vmul.f32 %v825, %v841
  %845 = vrot.lane.b32.xlu0 %v843, 32
  %v846 = vpop.permute.xlu0 %845
  %848 = vst.msk [vmem:[%s2] sm:$0xff] %vm27, %v846
  %850 = vrot.lane.b32.xlu0 %v837, 96
  %v851 = vpop.permute.xlu0 %850
  %853 = vst.msk [vmem:[%s3] sm:$0xff] %vm27, %v851
  // Predicated region
  $region14: #{encoder_forward.3} parent=0 // pred_check
    _
  $region15: #{encoder_forward.3} parent=0 // pred_check_branch
    %855 = sbr.rel (0) target = $region17
  $region16: #{encoder_forward.3} parent=0 // pred_region
    _
  $region17: #{encoder_forward.3} parent=0 // pred_fallthru
    _
  // Predicated region
  $region18: #{encoder_forward.3} parent=0 // pred_check
    _
  $region19: #{encoder_forward.3} parent=0 // pred_check_branch
    %857 = sbr.rel (0) target = $region21
  $region20: #{encoder_forward.3} parent=0 // pred_region
    _
  $region21: #{encoder_forward.3} parent=0 // pred_fallthru
    _
  // Predicated region
  $region22: #{encoder_forward.3} parent=0 // pred_check
    _
  $region23: #{encoder_forward.3} parent=0 // pred_check_branch
    %859 = sbr.rel (0) target = $region25
  $region24: #{encoder_forward.3} parent=0 // pred_region
    _
  $region25: #{encoder_forward.3} parent=0 // pred_fallthru
    _
  // Predicated region
  $region26: #{encoder_forward.3} parent=0 // pred_check
    _
  $region27: #{encoder_forward.3} parent=0 // pred_check_branch
    %861 = sbr.rel (0) target = $region29
  $region28: #{encoder_forward.3} parent=0 // pred_region
    _
  $region29: #{encoder_forward.3} parent=0 // pred_fallthru
    _

</llo_original>
